<compile_context>
chip_gen: v6e
topology: v6e:2x2x1
jax: 0.10.0
libtpu: 0.0.40
codegen_flags: <defaults>
</compile_context>

<pallas_src>
import functools

import jax
import jax.numpy as jnp
from jax import lax
from jax.experimental import pallas as pl
from jax.experimental.pallas import tpu as pltpu


def _ksub_kernel(x_ref, wenc_ref, gbd_ref, wdec_ref, o_ref, *, k, d):
  """One grid point = one B tile; all replicates and clusters handled inside."""
  r = wdec_ref.shape[0]
  kd = k * d
  tB = x_ref.shape[0]

  x = x_ref[...]                                     # (tB, D)  f32
  xb = x.astype(jnp.bfloat16)

  # Fused encode over all replicates and clusters:
  # (tB, D) @ (D, r*k*d) -> (tB, r*k*d), f32 accumulation on the MXU.
  z_all = jnp.dot(xb, wenc_ref[...], preferred_element_type=jnp.float32)

  # Column index within a replicate's k*d block (hoisted out of the r loop).
  col_ids = lax.broadcasted_iota(jnp.int32, (tB, kd), 1)

  for ri in range(r):                                # short static unroll
    z_r = z_all[:, ri * kd:(ri + 1) * kd]            # (tB, kd)  f32
    zb_r = z_r.astype(jnp.bfloat16)

    # Quadratic-form term via the per-replicate block-diagonal Gram matrix:
    # (z @ G_bd)[:, c*d:(c+1)*d] == z_c @ G_c.
    zg_r = jnp.dot(zb_r, gbd_ref[ri], preferred_element_type=jnp.float32)
    term = 0.5 * z_r * zg_r - z_r * z_r              # (tB, kd)  f32

    # Per-cluster surrogate losses (true loss minus the per-sample constant
    # 0.5*||x||^2) and running argmin.  Strict '<' keeps the lowest cluster
    # index on ties (matches jnp.argmin / torch first-index semantics).
    best = None
    best_idx = None
    for ci in range(k):
      s_c = jnp.sum(term[:, ci * d:(ci + 1) * d], axis=-1, keepdims=True)
      if ci == 0:
        best = s_c
        best_idx = jnp.zeros(s_c.shape, jnp.int32)
      else:
        better = s_c < best
        best = jnp.where(better, s_c, best)
        best_idx = jnp.where(better, jnp.int32(ci), best_idx)

    # Single masked decode of the winning cluster: zero every non-winner
    # d-block of z, then one (tB, k*d) @ (k*d, D) matmul.
    win_mask = jnp.logical_and(col_ids >= best_idx * d,
                               col_ids < (best_idx + 1) * d)
    z_win = jnp.where(win_mask, z_r, 0.0).astype(jnp.bfloat16)
    xr = jnp.dot(z_win, wdec_ref[ri], preferred_element_type=jnp.float32)
    o_ref[ri] = xr.astype(o_ref.dtype)


def _pick_b_tile(B, D, r, vmem_budget_bytes=24 * 1024 * 1024):
  """Largest B tile (<=1024) whose double-buffered x + (r,tB,D) out blocks fit."""
  def fits(t):
    # double-buffered f32 x block + f32 (r, tB, D) output block
    return 2 * 4 * t * D * (1 + r) <= vmem_budget_bytes

  for t in (1024, 512, 256, 128, 64, 32, 16, 8):
    if B % t == 0 and fits(t):
      return t
  # B not divisible by 8 (or huge r*D): pad B up to a fitting tile rather than
  # using one full-B block (which can exceed VMEM, hit first on v7x's 64 MiB).
  cap = max(8, min(512, pl.next_power_of_2(B)))
  for t in (512, 256, 128, 64, 32, 16, 8):
    if t <= cap and fits(t):
      return t
  return 8


@jax.jit
def ksubspace_forward(x, Us):
  """x: (B, D) f32; Us: (r, k, D, d) f32  ->  x_: (r, B, D) f32."""
  B, D = x.shape
  r, k, _, d = Us.shape
  kd = k * d
  rkd = r * kd

  tB = _pick_b_tile(B, D, r)
  Bp = pl.cdiv(B, tB) * tB
  if Bp != B:
    x = jnp.pad(x, ((0, Bp - B), (0, 0)))   # zero rows; sliced off after
  nbt = Bp // tB

  Ub = Us.astype(jnp.bfloat16)
  # Encode weights, all replicates folded: column ri*k*d + ci*d + j == Us[ri,ci,:,j].
  W_enc = jnp.transpose(Ub, (2, 0, 1, 3)).reshape(D, rkd)          # (D, r*k*d)
  # Decode weights per replicate: row ci*d + j of W_dec[ri] == Us[ri,ci,:,j].
  W_dec = jnp.transpose(Ub, (0, 1, 3, 2)).reshape(r, kd, D)        # (r, k*d, D)
  # Per-replicate block-diagonal Gram matrices G_c = U_c^T U_c (bf16 operands,
  # f32 accumulation, mirroring the decode-path numerics).
  G = jnp.einsum('rkai,rkaj->rkij', Ub, Ub,
                 preferred_element_type=jnp.float32)               # (r, k, d, d)
  G_bd = jnp.zeros((r, kd, kd), jnp.float32)
  for ci in range(k):
    G_bd = G_bd.at[:, ci * d:(ci + 1) * d, ci * d:(ci + 1) * d].set(G[:, ci])
  G_bd = G_bd.astype(jnp.bfloat16)

  grid_spec = pltpu.PrefetchScalarGridSpec(
      num_scalar_prefetch=0,
      grid=(nbt,),                                   # single B-tile axis
      in_specs=[
          pl.BlockSpec((tB, D), lambda bi: (bi, 0)),
          # Weight / Gram blocks are grid-invariant -> fetched once, resident.
          pl.BlockSpec((D, rkd), lambda bi: (0, 0)),
          pl.BlockSpec((r, kd, kd), lambda bi: (0, 0, 0)),
          pl.BlockSpec((r, kd, D), lambda bi: (0, 0, 0)),
      ],
      out_specs=pl.BlockSpec((r, tB, D), lambda bi: (0, bi, 0)),
  )

  cost = pl.CostEstimate(
      flops=(2 * Bp * D * rkd                        # fused encode
             + 2 * Bp * r * kd * kd                  # Gram quadratic form
             + 2 * Bp * r * kd * D),                 # masked winner decode
      transcendentals=0,
      bytes_accessed=(Bp * D * 4                     # x read once
                      + (D * rkd + r * kd * kd + r * kd * D) * 2  # bf16 weights
                      + r * Bp * D * 4),             # f32 output write
  )

  out = pl.pallas_call(
      functools.partial(_ksub_kernel, k=k, d=d),
      out_shape=jax.ShapeDtypeStruct((r, Bp, D), jnp.float32),
      grid_spec=grid_spec,
      compiler_params=pltpu.CompilerParams(
          dimension_semantics=("parallel",)),
      cost_estimate=cost,
  )(x, W_enc, G_bd, W_dec)

  if Bp != B:
    out = out[:, :B, :]
  return out


def ksubspace_forward_ref(x, Us):
  """Pure-JAX reference mirroring the module forward with the same bf16-operand
  / f32-accumulation numerics and the same argmin-equivalent surrogate loss as
  the kernel (surrogate == loss - 0.5*||x||^2, a per-sample constant), so the
  cluster selection and values match the kernel."""
  xb = x.astype(jnp.bfloat16)
  Ub = Us.astype(jnp.bfloat16)
  z = jnp.einsum('bD,rkDe->rkbe', xb, Ub, preferred_element_type=jnp.float32)
  zb = z.astype(jnp.bfloat16)
  G = jnp.einsum('rkai,rkaj->rkij', Ub, Ub,
                 preferred_element_type=jnp.float32).astype(jnp.bfloat16)
  zg = jnp.einsum('rkbe,rkef->rkbf', zb, G, preferred_element_type=jnp.float32)
  s = 0.5 * jnp.sum(z * zg, axis=-1) - jnp.sum(z * z, axis=-1)     # (r, k, B)
  groups = jnp.argmin(s, axis=1)                                   # (r, B)
  xr = jnp.einsum('rkbe,rkDe->rkbD', zb, Ub, preferred_element_type=jnp.float32)
  sel = jnp.take_along_axis(xr, groups[:, None, :, None], axis=1)[:, 0]
  return sel                                                       # (r, B, D)


if __name__ == "__main__":
  # Module-consistent small shapes: replicates r=3, clusters k=4, ambient D=128,
  # subspace dim d=16, batch B=32.
  r, k, D, d, B = 3, 4, 128, 16, 32

  key = jax.random.PRNGKey(0)
  kx, ku = jax.random.split(key)

  x = jax.random.normal(kx, (B, D), dtype=jnp.float32)
  # reset_parameters(): Us ~ Normal(0, 0.1/sqrt(D)); affine=False -> no bs.
  std = 0.1 / (D ** 0.5)
  Us = std * jax.random.normal(ku, (r, k, D, d), dtype=jnp.float32)

  out = ksubspace_forward(x, Us)
  out = jax.block_until_ready(out)

  ref = ksubspace_forward_ref(x, Us)
  assert out.shape == (r, B, D)
  assert jnp.allclose(out, ref, atol=1e-5, rtol=1e-3), "mismatch vs reference"

  print("KERNEL_OK")
</pallas_src>

<mosaic_0001>
module attributes {stable_mosaic.version = 11 : i64} {
  func.func @_ksub_kernel(%arg0: i32, %arg1: memref<32x128xf32, #tpu.memory_space<vmem>>, %arg2: memref<128x192xbf16, #tpu.memory_space<vmem>>, %arg3: memref<3x64x64xbf16, #tpu.memory_space<vmem>>, %arg4: memref<3x64x128xbf16, #tpu.memory_space<vmem>>, %arg5: memref<3x32x128xf32, #tpu.memory_space<vmem>>) attributes {dimension_semantics = [#tpu.dimension_semantics<parallel>], iteration_bounds = array<i64: 1>, scalar_prefetch = 0 : i64, scratch_operands = 0 : i64, tpu.core_type = #tpu.core_type<tc>, window_params = [{transform_indices = @transform_0, window_bounds = array<i64: 32, 128>}, {pipeline_mode = #tpu.pipeline_mode<synchronous>, transform_indices = @transform_1, window_bounds = array<i64: 128, 192>}, {pipeline_mode = #tpu.pipeline_mode<synchronous>, transform_indices = @transform_2, window_bounds = array<i64: 3, 64, 64>}, {pipeline_mode = #tpu.pipeline_mode<synchronous>, transform_indices = @transform_3, window_bounds = array<i64: 3, 64, 128>}, {transform_indices = @transform_4, window_bounds = array<i64: 3, 32, 128>}]} {
    %c0 = arith.constant 0 : index
    %c0_0 = arith.constant 0 : index
    %0 = vector.load %arg1[%c0, %c0_0] : memref<32x128xf32, #tpu.memory_space<vmem>>, vector<32x128xf32>
    %1 = arith.truncf %0 : vector<32x128xf32> to vector<32x128xbf16>
    %c0_1 = arith.constant 0 : index
    %c0_2 = arith.constant 0 : index
    %2 = vector.load %arg2[%c0_1, %c0_2] : memref<128x192xbf16, #tpu.memory_space<vmem>>, vector<128x192xbf16>
    %cst = arith.constant dense<0.000000e+00> : vector<32x192xf32>
    %3 = tpu.matmul %1, %2, %cst {dimension_numbers = #tpu.dot_dimension_numbers<[1], [0], [0], [1], [0, 0, 1, 1], [], []>} : vector<32x128xbf16>, vector<128x192xbf16>, vector<32x192xf32> -> vector<32x192xf32>
    %4 = tpu.iota {dimensions = array<i32: 1>} : vector<32x64xi32>
    %5 = vector.extract_strided_slice %3 {offsets = [0, 0], sizes = [32, 64], strides = [1, 1]} : vector<32x192xf32> to vector<32x64xf32>
    %6 = arith.truncf %5 : vector<32x64xf32> to vector<32x64xbf16>
    %c0_3 = arith.constant 0 : index
    %c0_4 = arith.constant 0 : index
    %c0_5 = arith.constant 0 : index
    %7 = vector.load %arg3[%c0_3, %c0_4, %c0_5] : memref<3x64x64xbf16, #tpu.memory_space<vmem>>, vector<1x64x64xbf16>
    %8 = vector.shape_cast %7 : vector<1x64x64xbf16> to vector<64x64xbf16>
    %cst_6 = arith.constant dense<0.000000e+00> : vector<32x64xf32>
    %9 = tpu.matmul %6, %8, %cst_6 {dimension_numbers = #tpu.dot_dimension_numbers<[1], [0], [0], [1], [0, 0, 1, 1], [], []>} : vector<32x64xbf16>, vector<64x64xbf16>, vector<32x64xf32> -> vector<32x64xf32>
    %cst_7 = arith.constant 5.000000e-01 : f32
    %10 = vector.broadcast %cst_7 : f32 to vector<32x64xf32>
    %11 = arith.mulf %10, %5 : vector<32x64xf32>
    %12 = arith.mulf %11, %9 : vector<32x64xf32>
    %13 = arith.mulf %5, %5 : vector<32x64xf32>
    %14 = arith.subf %12, %13 : vector<32x64xf32>
    %15 = vector.extract_strided_slice %14 {offsets = [0, 0], sizes = [32, 16], strides = [1, 1]} : vector<32x64xf32> to vector<32x16xf32>
    %cst_8 = arith.constant dense<0.000000e+00> : vector<32xf32>
    %16 = vector.multi_reduction <add>, %15, %cst_8 [1] : vector<32x16xf32> to vector<32xf32>
    %17 = vector.shape_cast %16 : vector<32xf32> to vector<32x1xf32>
    %c0_i32 = arith.constant 0 : i32
    %18 = vector.broadcast %c0_i32 : i32 to vector<32x1xi32>
    %19 = vector.extract_strided_slice %14 {offsets = [0, 16], sizes = [32, 16], strides = [1, 1]} : vector<32x64xf32> to vector<32x16xf32>
    %cst_9 = arith.constant dense<0.000000e+00> : vector<32xf32>
    %20 = vector.multi_reduction <add>, %19, %cst_9 [1] : vector<32x16xf32> to vector<32xf32>
    %21 = vector.shape_cast %20 : vector<32xf32> to vector<32x1xf32>
    %22 = arith.cmpf olt, %21, %17 : vector<32x1xf32>
    %23 = arith.select %22, %21, %17 : vector<32x1xi1>, vector<32x1xf32>
    %c1_i32 = arith.constant 1 : i32
    %24 = vector.broadcast %c1_i32 : i32 to vector<32x1xi32>
    %25 = arith.select %22, %24, %18 : vector<32x1xi1>, vector<32x1xi32>
    %26 = vector.extract_strided_slice %14 {offsets = [0, 32], sizes = [32, 16], strides = [1, 1]} : vector<32x64xf32> to vector<32x16xf32>
    %cst_10 = arith.constant dense<0.000000e+00> : vector<32xf32>
    %27 = vector.multi_reduction <add>, %26, %cst_10 [1] : vector<32x16xf32> to vector<32xf32>
    %28 = vector.shape_cast %27 : vector<32xf32> to vector<32x1xf32>
    %29 = arith.cmpf olt, %28, %23 : vector<32x1xf32>
    %30 = arith.select %29, %28, %23 : vector<32x1xi1>, vector<32x1xf32>
    %c2_i32 = arith.constant 2 : i32
    %31 = vector.broadcast %c2_i32 : i32 to vector<32x1xi32>
    %32 = arith.select %29, %31, %25 : vector<32x1xi1>, vector<32x1xi32>
    %33 = vector.extract_strided_slice %14 {offsets = [0, 48], sizes = [32, 16], strides = [1, 1]} : vector<32x64xf32> to vector<32x16xf32>
    %cst_11 = arith.constant dense<0.000000e+00> : vector<32xf32>
    %34 = vector.multi_reduction <add>, %33, %cst_11 [1] : vector<32x16xf32> to vector<32xf32>
    %35 = vector.shape_cast %34 : vector<32xf32> to vector<32x1xf32>
    %36 = arith.cmpf olt, %35, %30 : vector<32x1xf32>
    %c3_i32 = arith.constant 3 : i32
    %37 = vector.broadcast %c3_i32 : i32 to vector<32x1xi32>
    %38 = arith.select %36, %37, %32 : vector<32x1xi1>, vector<32x1xi32>
    %c16_i32 = arith.constant 16 : i32
    %39 = vector.broadcast %c16_i32 : i32 to vector<32x1xi32>
    %40 = arith.muli %38, %39 : vector<32x1xi32>
    %41 = vector.broadcast %40 : vector<32x1xi32> to vector<32x64xi32>
    %42 = arith.cmpi sge, %4, %41 : vector<32x64xi32>
    %c1_i32_12 = arith.constant 1 : i32
    %43 = vector.broadcast %c1_i32_12 : i32 to vector<32x1xi32>
    %44 = arith.addi %38, %43 : vector<32x1xi32>
    %c16_i32_13 = arith.constant 16 : i32
    %45 = vector.broadcast %c16_i32_13 : i32 to vector<32x1xi32>
    %46 = arith.muli %44, %45 : vector<32x1xi32>
    %47 = vector.broadcast %46 : vector<32x1xi32> to vector<32x64xi32>
    %48 = arith.cmpi slt, %4, %47 : vector<32x64xi32>
    %49 = arith.andi %42, %48 : vector<32x64xi1>
    %cst_14 = arith.constant 0.000000e+00 : f32
    %50 = vector.broadcast %cst_14 : f32 to vector<32x64xf32>
    %51 = arith.select %49, %5, %50 : vector<32x64xi1>, vector<32x64xf32>
    %52 = arith.truncf %51 : vector<32x64xf32> to vector<32x64xbf16>
    %c0_15 = arith.constant 0 : index
    %c0_16 = arith.constant 0 : index
    %c0_17 = arith.constant 0 : index
    %53 = vector.load %arg4[%c0_15, %c0_16, %c0_17] : memref<3x64x128xbf16, #tpu.memory_space<vmem>>, vector<1x64x128xbf16>
    %54 = vector.shape_cast %53 : vector<1x64x128xbf16> to vector<64x128xbf16>
    %cst_18 = arith.constant dense<0.000000e+00> : vector<32x128xf32>
    %55 = tpu.matmul %52, %54, %cst_18 {dimension_numbers = #tpu.dot_dimension_numbers<[1], [0], [0], [1], [0, 0, 1, 1], [], []>} : vector<32x64xbf16>, vector<64x128xbf16>, vector<32x128xf32> -> vector<32x128xf32>
    %c0_19 = arith.constant 0 : index
    %c0_20 = arith.constant 0 : index
    %c0_21 = arith.constant 0 : index
    %56 = vector.load %arg5[%c0_19, %c0_20, %c0_21] : memref<3x32x128xf32, #tpu.memory_space<vmem>>, vector<1x32x128xf32>
    %57 = vector.shape_cast %56 : vector<1x32x128xf32> to vector<32x128xf32>
    %58 = vector.shape_cast %55 : vector<32x128xf32> to vector<1x32x128xf32>
    tpu.vector_store %arg5[%c0_19, %c0_20, %c0_21], %58 {strides = array<i32>} : memref<3x32x128xf32, #tpu.memory_space<vmem>>, vector<1x32x128xf32>,
    %59 = vector.extract_strided_slice %3 {offsets = [0, 64], sizes = [32, 64], strides = [1, 1]} : vector<32x192xf32> to vector<32x64xf32>
    %60 = arith.truncf %59 : vector<32x64xf32> to vector<32x64xbf16>
    %c1 = arith.constant 1 : index
    %c0_22 = arith.constant 0 : index
    %c0_23 = arith.constant 0 : index
    %61 = vector.load %arg3[%c1, %c0_22, %c0_23] : memref<3x64x64xbf16, #tpu.memory_space<vmem>>, vector<1x64x64xbf16>
    %62 = vector.shape_cast %61 : vector<1x64x64xbf16> to vector<64x64xbf16>
    %cst_24 = arith.constant dense<0.000000e+00> : vector<32x64xf32>
    %63 = tpu.matmul %60, %62, %cst_24 {dimension_numbers = #tpu.dot_dimension_numbers<[1], [0], [0], [1], [0, 0, 1, 1], [], []>} : vector<32x64xbf16>, vector<64x64xbf16>, vector<32x64xf32> -> vector<32x64xf32>
    %cst_25 = arith.constant 5.000000e-01 : f32
    %64 = vector.broadcast %cst_25 : f32 to vector<32x64xf32>
    %65 = arith.mulf %64, %59 : vector<32x64xf32>
    %66 = arith.mulf %65, %63 : vector<32x64xf32>
    %67 = arith.mulf %59, %59 : vector<32x64xf32>
    %68 = arith.subf %66, %67 : vector<32x64xf32>
    %69 = vector.extract_strided_slice %68 {offsets = [0, 0], sizes = [32, 16], strides = [1, 1]} : vector<32x64xf32> to vector<32x16xf32>
    %cst_26 = arith.constant dense<0.000000e+00> : vector<32xf32>
    %70 = vector.multi_reduction <add>, %69, %cst_26 [1] : vector<32x16xf32> to vector<32xf32>
    %71 = vector.shape_cast %70 : vector<32xf32> to vector<32x1xf32>
    %c0_i32_27 = arith.constant 0 : i32
    %72 = vector.broadcast %c0_i32_27 : i32 to vector<32x1xi32>
    %73 = vector.extract_strided_slice %68 {offsets = [0, 16], sizes = [32, 16], strides = [1, 1]} : vector<32x64xf32> to vector<32x16xf32>
    %cst_28 = arith.constant dense<0.000000e+00> : vector<32xf32>
    %74 = vector.multi_reduction <add>, %73, %cst_28 [1] : vector<32x16xf32> to vector<32xf32>
    %75 = vector.shape_cast %74 : vector<32xf32> to vector<32x1xf32>
    %76 = arith.cmpf olt, %75, %71 : vector<32x1xf32>
    %77 = arith.select %76, %75, %71 : vector<32x1xi1>, vector<32x1xf32>
    %c1_i32_29 = arith.constant 1 : i32
    %78 = vector.broadcast %c1_i32_29 : i32 to vector<32x1xi32>
    %79 = arith.select %76, %78, %72 : vector<32x1xi1>, vector<32x1xi32>
    %80 = vector.extract_strided_slice %68 {offsets = [0, 32], sizes = [32, 16], strides = [1, 1]} : vector<32x64xf32> to vector<32x16xf32>
    %cst_30 = arith.constant dense<0.000000e+00> : vector<32xf32>
    %81 = vector.multi_reduction <add>, %80, %cst_30 [1] : vector<32x16xf32> to vector<32xf32>
    %82 = vector.shape_cast %81 : vector<32xf32> to vector<32x1xf32>
    %83 = arith.cmpf olt, %82, %77 : vector<32x1xf32>
    %84 = arith.select %83, %82, %77 : vector<32x1xi1>, vector<32x1xf32>
    %c2_i32_31 = arith.constant 2 : i32
    %85 = vector.broadcast %c2_i32_31 : i32 to vector<32x1xi32>
    %86 = arith.select %83, %85, %79 : vector<32x1xi1>, vector<32x1xi32>
    %87 = vector.extract_strided_slice %68 {offsets = [0, 48], sizes = [32, 16], strides = [1, 1]} : vector<32x64xf32> to vector<32x16xf32>
    %cst_32 = arith.constant dense<0.000000e+00> : vector<32xf32>
    %88 = vector.multi_reduction <add>, %87, %cst_32 [1] : vector<32x16xf32> to vector<32xf32>
    %89 = vector.shape_cast %88 : vector<32xf32> to vector<32x1xf32>
    %90 = arith.cmpf olt, %89, %84 : vector<32x1xf32>
    %c3_i32_33 = arith.constant 3 : i32
    %91 = vector.broadcast %c3_i32_33 : i32 to vector<32x1xi32>
    %92 = arith.select %90, %91, %86 : vector<32x1xi1>, vector<32x1xi32>
    %c16_i32_34 = arith.constant 16 : i32
    %93 = vector.broadcast %c16_i32_34 : i32 to vector<32x1xi32>
    %94 = arith.muli %92, %93 : vector<32x1xi32>
    %95 = vector.broadcast %94 : vector<32x1xi32> to vector<32x64xi32>
    %96 = arith.cmpi sge, %4, %95 : vector<32x64xi32>
    %c1_i32_35 = arith.constant 1 : i32
    %97 = vector.broadcast %c1_i32_35 : i32 to vector<32x1xi32>
    %98 = arith.addi %92, %97 : vector<32x1xi32>
    %c16_i32_36 = arith.constant 16 : i32
    %99 = vector.broadcast %c16_i32_36 : i32 to vector<32x1xi32>
    %100 = arith.muli %98, %99 : vector<32x1xi32>
    %101 = vector.broadcast %100 : vector<32x1xi32> to vector<32x64xi32>
    %102 = arith.cmpi slt, %4, %101 : vector<32x64xi32>
    %103 = arith.andi %96, %102 : vector<32x64xi1>
    %cst_37 = arith.constant 0.000000e+00 : f32
    %104 = vector.broadcast %cst_37 : f32 to vector<32x64xf32>
    %105 = arith.select %103, %59, %104 : vector<32x64xi1>, vector<32x64xf32>
    %106 = arith.truncf %105 : vector<32x64xf32> to vector<32x64xbf16>
    %c1_38 = arith.constant 1 : index
    %c0_39 = arith.constant 0 : index
    %c0_40 = arith.constant 0 : index
    %107 = vector.load %arg4[%c1_38, %c0_39, %c0_40] : memref<3x64x128xbf16, #tpu.memory_space<vmem>>, vector<1x64x128xbf16>
    %108 = vector.shape_cast %107 : vector<1x64x128xbf16> to vector<64x128xbf16>
    %cst_41 = arith.constant dense<0.000000e+00> : vector<32x128xf32>
    %109 = tpu.matmul %106, %108, %cst_41 {dimension_numbers = #tpu.dot_dimension_numbers<[1], [0], [0], [1], [0, 0, 1, 1], [], []>} : vector<32x64xbf16>, vector<64x128xbf16>, vector<32x128xf32> -> vector<32x128xf32>
    %c1_42 = arith.constant 1 : index
    %c0_43 = arith.constant 0 : index
    %c0_44 = arith.constant 0 : index
    %110 = vector.load %arg5[%c1_42, %c0_43, %c0_44] : memref<3x32x128xf32, #tpu.memory_space<vmem>>, vector<1x32x128xf32>
    %111 = vector.shape_cast %110 : vector<1x32x128xf32> to vector<32x128xf32>
    %112 = vector.shape_cast %109 : vector<32x128xf32> to vector<1x32x128xf32>
    tpu.vector_store %arg5[%c1_42, %c0_43, %c0_44], %112 {strides = array<i32>} : memref<3x32x128xf32, #tpu.memory_space<vmem>>, vector<1x32x128xf32>,
    %113 = vector.extract_strided_slice %3 {offsets = [0, 128], sizes = [32, 64], strides = [1, 1]} : vector<32x192xf32> to vector<32x64xf32>
    %114 = arith.truncf %113 : vector<32x64xf32> to vector<32x64xbf16>
    %c2 = arith.constant 2 : index
    %c0_45 = arith.constant 0 : index
    %c0_46 = arith.constant 0 : index
    %115 = vector.load %arg3[%c2, %c0_45, %c0_46] : memref<3x64x64xbf16, #tpu.memory_space<vmem>>, vector<1x64x64xbf16>
    %116 = vector.shape_cast %115 : vector<1x64x64xbf16> to vector<64x64xbf16>
    %cst_47 = arith.constant dense<0.000000e+00> : vector<32x64xf32>
    %117 = tpu.matmul %114, %116, %cst_47 {dimension_numbers = #tpu.dot_dimension_numbers<[1], [0], [0], [1], [0, 0, 1, 1], [], []>} : vector<32x64xbf16>, vector<64x64xbf16>, vector<32x64xf32> -> vector<32x64xf32>
    %cst_48 = arith.constant 5.000000e-01 : f32
    %118 = vector.broadcast %cst_48 : f32 to vector<32x64xf32>
    %119 = arith.mulf %118, %113 : vector<32x64xf32>
    %120 = arith.mulf %119, %117 : vector<32x64xf32>
    %121 = arith.mulf %113, %113 : vector<32x64xf32>
    %122 = arith.subf %120, %121 : vector<32x64xf32>
    %123 = vector.extract_strided_slice %122 {offsets = [0, 0], sizes = [32, 16], strides = [1, 1]} : vector<32x64xf32> to vector<32x16xf32>
    %cst_49 = arith.constant dense<0.000000e+00> : vector<32xf32>
    %124 = vector.multi_reduction <add>, %123, %cst_49 [1] : vector<32x16xf32> to vector<32xf32>
    %125 = vector.shape_cast %124 : vector<32xf32> to vector<32x1xf32>
    %c0_i32_50 = arith.constant 0 : i32
    %126 = vector.broadcast %c0_i32_50 : i32 to vector<32x1xi32>
    %127 = vector.extract_strided_slice %122 {offsets = [0, 16], sizes = [32, 16], strides = [1, 1]} : vector<32x64xf32> to vector<32x16xf32>
    %cst_51 = arith.constant dense<0.000000e+00> : vector<32xf32>
    %128 = vector.multi_reduction <add>, %127, %cst_51 [1] : vector<32x16xf32> to vector<32xf32>
    %129 = vector.shape_cast %128 : vector<32xf32> to vector<32x1xf32>
    %130 = arith.cmpf olt, %129, %125 : vector<32x1xf32>
    %131 = arith.select %130, %129, %125 : vector<32x1xi1>, vector<32x1xf32>
    %c1_i32_52 = arith.constant 1 : i32
    %132 = vector.broadcast %c1_i32_52 : i32 to vector<32x1xi32>
    %133 = arith.select %130, %132, %126 : vector<32x1xi1>, vector<32x1xi32>
    %134 = vector.extract_strided_slice %122 {offsets = [0, 32], sizes = [32, 16], strides = [1, 1]} : vector<32x64xf32> to vector<32x16xf32>
    %cst_53 = arith.constant dense<0.000000e+00> : vector<32xf32>
    %135 = vector.multi_reduction <add>, %134, %cst_53 [1] : vector<32x16xf32> to vector<32xf32>
    %136 = vector.shape_cast %135 : vector<32xf32> to vector<32x1xf32>
    %137 = arith.cmpf olt, %136, %131 : vector<32x1xf32>
    %138 = arith.select %137, %136, %131 : vector<32x1xi1>, vector<32x1xf32>
    %c2_i32_54 = arith.constant 2 : i32
    %139 = vector.broadcast %c2_i32_54 : i32 to vector<32x1xi32>
    %140 = arith.select %137, %139, %133 : vector<32x1xi1>, vector<32x1xi32>
    %141 = vector.extract_strided_slice %122 {offsets = [0, 48], sizes = [32, 16], strides = [1, 1]} : vector<32x64xf32> to vector<32x16xf32>
    %cst_55 = arith.constant dense<0.000000e+00> : vector<32xf32>
    %142 = vector.multi_reduction <add>, %141, %cst_55 [1] : vector<32x16xf32> to vector<32xf32>
    %143 = vector.shape_cast %142 : vector<32xf32> to vector<32x1xf32>
    %144 = arith.cmpf olt, %143, %138 : vector<32x1xf32>
    %c3_i32_56 = arith.constant 3 : i32
    %145 = vector.broadcast %c3_i32_56 : i32 to vector<32x1xi32>
    %146 = arith.select %144, %145, %140 : vector<32x1xi1>, vector<32x1xi32>
    %c16_i32_57 = arith.constant 16 : i32
    %147 = vector.broadcast %c16_i32_57 : i32 to vector<32x1xi32>
    %148 = arith.muli %146, %147 : vector<32x1xi32>
    %149 = vector.broadcast %148 : vector<32x1xi32> to vector<32x64xi32>
    %150 = arith.cmpi sge, %4, %149 : vector<32x64xi32>
    %c1_i32_58 = arith.constant 1 : i32
    %151 = vector.broadcast %c1_i32_58 : i32 to vector<32x1xi32>
    %152 = arith.addi %146, %151 : vector<32x1xi32>
    %c16_i32_59 = arith.constant 16 : i32
    %153 = vector.broadcast %c16_i32_59 : i32 to vector<32x1xi32>
    %154 = arith.muli %152, %153 : vector<32x1xi32>
    %155 = vector.broadcast %154 : vector<32x1xi32> to vector<32x64xi32>
    %156 = arith.cmpi slt, %4, %155 : vector<32x64xi32>
    %157 = arith.andi %150, %156 : vector<32x64xi1>
    %cst_60 = arith.constant 0.000000e+00 : f32
    %158 = vector.broadcast %cst_60 : f32 to vector<32x64xf32>
    %159 = arith.select %157, %113, %158 : vector<32x64xi1>, vector<32x64xf32>
    %160 = arith.truncf %159 : vector<32x64xf32> to vector<32x64xbf16>
    %c2_61 = arith.constant 2 : index
    %c0_62 = arith.constant 0 : index
    %c0_63 = arith.constant 0 : index
    %161 = vector.load %arg4[%c2_61, %c0_62, %c0_63] : memref<3x64x128xbf16, #tpu.memory_space<vmem>>, vector<1x64x128xbf16>
    %162 = vector.shape_cast %161 : vector<1x64x128xbf16> to vector<64x128xbf16>
    %cst_64 = arith.constant dense<0.000000e+00> : vector<32x128xf32>
    %163 = tpu.matmul %160, %162, %cst_64 {dimension_numbers = #tpu.dot_dimension_numbers<[1], [0], [0], [1], [0, 0, 1, 1], [], []>} : vector<32x64xbf16>, vector<64x128xbf16>, vector<32x128xf32> -> vector<32x128xf32>
    %c2_65 = arith.constant 2 : index
    %c0_66 = arith.constant 0 : index
    %c0_67 = arith.constant 0 : index
    %164 = vector.load %arg5[%c2_65, %c0_66, %c0_67] : memref<3x32x128xf32, #tpu.memory_space<vmem>>, vector<1x32x128xf32>
    %165 = vector.shape_cast %164 : vector<1x32x128xf32> to vector<32x128xf32>
    %166 = vector.shape_cast %163 : vector<32x128xf32> to vector<1x32x128xf32>
    tpu.vector_store %arg5[%c2_65, %c0_66, %c0_67], %166 {strides = array<i32>} : memref<3x32x128xf32, #tpu.memory_space<vmem>>, vector<1x32x128xf32>,
    return
  }
  func.func @transform_0(%arg0: i32) -> (i32, i32) {
    %c0_i32 = arith.constant 0 : i32
    %c0_i32_0 = arith.constant 0 : i32
    return %arg0, %c0_i32 : i32, i32
  }
  func.func @transform_1(%arg0: i32) -> (i32, i32) {
    %c0_i32 = arith.constant 0 : i32
    %c0_i32_0 = arith.constant 0 : i32
    %c0_i32_1 = arith.constant 0 : i32
    return %c0_i32, %c0_i32_0 : i32, i32
  }
  func.func @transform_2(%arg0: i32) -> (i32, i32, i32) {
    %c0_i32 = arith.constant 0 : i32
    %c0_i32_0 = arith.constant 0 : i32
    %c0_i32_1 = arith.constant 0 : i32
    %c0_i32_2 = arith.constant 0 : i32
    return %c0_i32, %c0_i32_0, %c0_i32_1 : i32, i32, i32
  }
  func.func @transform_3(%arg0: i32) -> (i32, i32, i32) {
    %c0_i32 = arith.constant 0 : i32
    %c0_i32_0 = arith.constant 0 : i32
    %c0_i32_1 = arith.constant 0 : i32
    %c0_i32_2 = arith.constant 0 : i32
    return %c0_i32, %c0_i32_0, %c0_i32_1 : i32, i32, i32
  }
  func.func @transform_4(%arg0: i32) -> (i32, i32, i32) {
    %c0_i32 = arith.constant 0 : i32
    %c0_i32_0 = arith.constant 0 : i32
    %c0_i32_1 = arith.constant 0 : i32
    return %c0_i32, %arg0, %c0_i32_0 : i32, i32, i32
  }
}

</mosaic_0001>

<llo_original>
// kernel: ksubspace_forward.1
$region0: #{ksubspace_forward.1}
  #allocation0 [shape = 'u32[]', space=smem, size = 0x4, offset = 0x4, fixed_abs, tag = 'smem constant byte address 0x4 - core index']
  #allocation1 [shape = 'u32[144,128]{1,0:T(1,128)}', space=vmem, size = 0x12000, scoped, tag = 'internal scratch']
  %s0 = inlined_call_operand.vmem [shape: f32[32,128], index: 0, kind: input, shape index: {}]
  %s1 = inlined_call_operand.vmem [shape: bf16[128,192], index: 1, kind: input, shape index: {}]
  %s2 = inlined_call_operand.vmem [shape: bf16[3,64,64], index: 2, kind: input, shape index: {}]
  %s3 = inlined_call_operand.vmem [shape: bf16[3,64,128], index: 3, kind: input, shape index: {}]
  %s4 = inlined_call_operand.hbm [shape: f32[3,32,128], index: 4, kind: output, shape index: {}]
  %s5 = sld [smem:[#allocation0]]
  $region26: #{ksubspace_forward.1} parent=0
    _
  %s7 = ssub.s32 1, %s5
  %s8 = scalar_select 0, %s7, %s5
  $region1: #{ksubspace_forward.1} parent=0
    #allocation2 [shape = 'u8[49152]{0}', space=vmem, size = 0xc000, scoped, tag = 'output window, operand 0, single buffered']
    #allocation3 [shape = 's32[1]{0}', space=sflag, size = 0x4, scoped, tag = 'scoped memory for ksubspace_forward.1']
    %9 = vsyncpa [#allocation3], 0
    // Predicated region
    $region2: #{ksubspace_forward.1} parent=1 // pred_check
      _
    $region3: #{ksubspace_forward.1} parent=1 // pred_check_branch
      %11 = sbr.rel (0) target = $region5
    $region4: #{ksubspace_forward.1} parent=1 // pred_region
      _
    $region5: #{ksubspace_forward.1} parent=1 // pred_fallthru
      _
    // Predicated region
    $region6: #{ksubspace_forward.1} parent=1 // pred_check
      _
    $region7: #{ksubspace_forward.1} parent=1 // pred_check_branch
      %13 = sbr.rel (0) target = $region9
    $region8: #{ksubspace_forward.1} parent=1 // pred_region
      _
    $region9: #{ksubspace_forward.1} parent=1 // pred_fallthru
      _
    // Predicated region
    $region10: #{ksubspace_forward.1} parent=1 // pred_check
      _
    $region11: #{ksubspace_forward.1} parent=1 // pred_check_branch
      %15 = sbr.rel (0) target = $region13
    $region12: #{ksubspace_forward.1} parent=1 // pred_region
      _
    $region13: #{ksubspace_forward.1} parent=1 // pred_fallthru
      _
    // Predicated region
    $region14: #{ksubspace_forward.1} parent=1 // pred_check
      _
    $region15: #{ksubspace_forward.1} parent=1 // pred_check_branch
      %17 = sbr.rel (0) target = $region17
    $region16: #{ksubspace_forward.1} parent=1 // pred_region
      _
    $region17: #{ksubspace_forward.1} parent=1 // pred_fallthru
      _
    %v19 = vld [vmem:[%s0] sm:$0xff]
    %v20 = vld [vmem:[%s0 + $0x8] sm:$0xff]
    %v21 = vld [vmem:[%s0 + $0x10] sm:$0xff]
    %v22 = vld [vmem:[%s0 + $0x18] sm:$0xff]
    %v23 = vpack.c.bf16 %v20, %v19
    %v24 = vpack.c.bf16 %v22, %v21
    %v25 = vld [vmem:[%s1] sm:$0xff]
    %v26 = vld [vmem:[%s1 + $0x8] sm:$0xff]
    %v27 = vld [vmem:[%s1 + $0x10] sm:$0xff]
    %v28 = vld [vmem:[%s1 + $0x18] sm:$0xff]
    %v29 = vld [vmem:[%s1 + $0x20] sm:$0xff]
    %v30 = vld [vmem:[%s1 + $0x28] sm:$0xff]
    %v31 = vld [vmem:[%s1 + $0x30] sm:$0xff]
    %v32 = vld [vmem:[%s1 + $0x38] sm:$0xff]
    %v33 = vld [vmem:[%s1 + $0x40] sm:$0xff]
    %v34 = vld [vmem:[%s1 + $0x48] sm:$0xff]
    %v35 = vld [vmem:[%s1 + $0x50] sm:$0xff]
    %v36 = vld [vmem:[%s1 + $0x58] sm:$0xff]
    %v37 = vld [vmem:[%s1 + $0x60] sm:$0xff]
    %v38 = vld [vmem:[%s1 + $0x68] sm:$0xff]
    %v39 = vld [vmem:[%s1 + $0x70] sm:$0xff]
    %v40 = vld [vmem:[%s1 + $0x78] sm:$0xff]
    %v57 = vunpack.c.l.b16 %v25
    %v58 = vunpack.c.h.b16 %v25
    %v59 = vunpack.c.l.b16 %v26
    %v60 = vunpack.c.h.b16 %v26
    %v61 = vunpack.c.l.b16 %v27
    %v62 = vunpack.c.h.b16 %v27
    %v63 = vunpack.c.l.b16 %v28
    %v64 = vunpack.c.h.b16 %v28
    %v65 = vunpack.c.l.b16 %v29
    %v66 = vunpack.c.h.b16 %v29
    %v67 = vunpack.c.l.b16 %v30
    %v68 = vunpack.c.h.b16 %v30
    %v69 = vunpack.c.l.b16 %v31
    %v70 = vunpack.c.h.b16 %v31
    %v71 = vunpack.c.l.b16 %v32
    %v72 = vunpack.c.h.b16 %v32
    %v73 = vunpack.c.l.b16 %v33
    %v74 = vunpack.c.h.b16 %v33
    %v75 = vunpack.c.l.b16 %v34
    %v76 = vunpack.c.h.b16 %v34
    %v77 = vunpack.c.l.b16 %v35
    %v78 = vunpack.c.h.b16 %v35
    %v79 = vunpack.c.l.b16 %v36
    %v80 = vunpack.c.h.b16 %v36
    %v81 = vunpack.c.l.b16 %v37
    %v82 = vunpack.c.h.b16 %v37
    %v83 = vunpack.c.l.b16 %v38
    %v84 = vunpack.c.h.b16 %v38
    %v85 = vunpack.c.l.b16 %v39
    %v86 = vunpack.c.h.b16 %v39
    %v87 = vunpack.c.l.b16 %v40
    %v88 = vunpack.c.h.b16 %v40
    %v89 = vpack.c.b16 %v59, %v57
    %v90 = vpack.c.b16 %v60, %v58
    %v91 = vpack.c.b16 %v63, %v61
    %v92 = vpack.c.b16 %v64, %v62
    %v93 = vpack.c.b16 %v67, %v65
    %v94 = vpack.c.b16 %v68, %v66
    %v95 = vpack.c.b16 %v71, %v69
    %v96 = vpack.c.b16 %v72, %v70
    %v97 = vpack.c.b16 %v75, %v73
    %v98 = vpack.c.b16 %v76, %v74
    %v99 = vpack.c.b16 %v79, %v77
    %v100 = vpack.c.b16 %v80, %v78
    %v101 = vpack.c.b16 %v83, %v81
    %v102 = vpack.c.b16 %v84, %v82
    %v103 = vpack.c.b16 %v87, %v85
    %v104 = vpack.c.b16 %v88, %v86
    %121 = vmatprep.subr.bf16.mxu0 %v104
    %122 = vmatpush1.bf16.msra.mxu0 %v103
    %123 = vmatprep.subr.bf16.mxu0 %v102
    %124 = vmatpush1.bf16.msra.mxu0 %v101
    %125 = vmatprep.subr.bf16.mxu0 %v100
    %126 = vmatpush1.bf16.msra.mxu0 %v99
    %127 = vmatprep.subr.bf16.mxu0 %v98
    %128 = vmatpush1.bf16.msra.mxu0 %v97
    %129 = vmatprep.subr.bf16.mxu0 %v96
    %130 = vmatpush1.bf16.msra.mxu0 %v95
    %131 = vmatprep.subr.bf16.mxu0 %v94
    %132 = vmatpush1.bf16.msra.mxu0 %v93
    %133 = vmatprep.subr.bf16.mxu0 %v92
    %134 = vmatpush1.bf16.msra.mxu0 %v91
    %135 = vmatprep.subr.bf16.mxu0 %v90
    %136 = vmatpush1.bf16.msra.mxu0 %v89
    %137 = vmatprep.subr.bf16.mxu0 0
    %138 = vmatpush2.bf16.msra.mxu0 0
    %139 = vmatprep.subr.bf16.mxu0 0
    %140 = vmatpush2.bf16.msra.mxu0 0
    %141 = vmatprep.subr.bf16.mxu0 0
    %142 = vmatpush2.bf16.msra.mxu0 0
    %143 = vmatprep.subr.bf16.mxu0 0
    %144 = vmatpush2.bf16.msra.mxu0 0
    %145 = vmatprep.subr.bf16.mxu0 0
    %146 = vmatpush2.bf16.msra.mxu0 0
    %147 = vmatprep.subr.bf16.mxu0 0
    %148 = vmatpush2.bf16.msra.mxu0 0
    %149 = vmatprep.subr.bf16.mxu0 0
    %150 = vmatpush2.bf16.msra.mxu0 0
    %151 = vmatprep.subr.bf16.mxu0 0
    %152 = vmatpush2.bf16.msra.mxu0 0
    %153 = vmatprep.mubr.bf16.mxu0 0
    %154 = vmatmul.mubr.bf16.gmra.mxu0 %v23
    %v155 = vpop.f32.mrf.mxu0
    %v156 = vadd.f32 0.0, %v155
    %v157 = vpop.f32.mrf.mxu0
    %v158 = vadd.f32 0.0, %v157
    %v159 = vpop.f32.mrf.mxu0
    %v160 = vadd.f32 0.0, %v159
    %v161 = vpop.f32.mrf.mxu0
    %v162 = vadd.f32 0.0, %v161
    %163 = vmatprep.mubr.bf16.mxu0 0
    %164 = vmatmul.mubr.bf16.gmra.mxu0 %v24
    %v165 = vpop.f32.mrf.mxu0
    %v166 = vadd.f32 0.0, %v165
    %v167 = vpop.f32.mrf.mxu0
    %v168 = vadd.f32 0.0, %v167
    %v169 = vpop.f32.mrf.mxu0
    %v170 = vadd.f32 0.0, %v169
    %v171 = vpop.f32.mrf.mxu0
    %v172 = vadd.f32 0.0, %v171
    %173 = vdwg.mxu0
    %v174 = vlaneseq
    %v175 = vand.u32 %v174, 127
    %v176 = vpack.c.bf16 %v160, %v156
    %v177 = vpack.c.bf16 %v170, %v166
    %v178 = vld [vmem:[%s2] sm:$0xf]
    %v179 = vld [vmem:[%s2 + $0x4] sm:$0xf]
    %v180 = vld [vmem:[%s2 + $0x8] sm:$0xf]
    %v181 = vld [vmem:[%s2 + $0xc] sm:$0xf]
    %v182 = vld [vmem:[%s2 + $0x10] sm:$0xf]
    %v183 = vld [vmem:[%s2 + $0x14] sm:$0xf]
    %v184 = vld [vmem:[%s2 + $0x18] sm:$0xf]
    %v185 = vld [vmem:[%s2 + $0x1c] sm:$0xf]
    %v194 = vunpack.c.l.b16 %v178
    %v195 = vunpack.c.l.b16 %v179
    %v196 = vunpack.c.l.b16 %v180
    %v197 = vunpack.c.l.b16 %v181
    %v198 = vunpack.c.l.b16 %v182
    %v199 = vunpack.c.l.b16 %v183
    %v200 = vunpack.c.l.b16 %v184
    %v201 = vunpack.c.l.b16 %v185
    %v202 = vpack.c.b16 %v195, %v194
    %v203 = vpack.c.b16 %v197, %v196
    %v204 = vpack.c.b16 %v199, %v198
    %v205 = vpack.c.b16 %v201, %v200
    %vm210 = vcmask 523264
    %v212 = vsel %vm210, %v176, 0
    %v215 = vsel %vm210, %v177, 0
    %217 = vmatprep.subr.bf16.mxu0 0
    %218 = vmatpush1.bf16.msra.mxu0 0
    %219 = vmatprep.subr.bf16.mxu0 0
    %220 = vmatpush1.bf16.msra.mxu0 0
    %221 = vmatprep.subr.bf16.mxu0 0
    %222 = vmatpush1.bf16.msra.mxu0 0
    %223 = vmatprep.subr.bf16.mxu0 0
    %224 = vmatpush1.bf16.msra.mxu0 0
    %225 = vmatprep.subr.bf16.mxu0 0
    %226 = vmatpush1.bf16.msra.mxu0 %v205
    %227 = vmatprep.subr.bf16.mxu0 0
    %228 = vmatpush1.bf16.msra.mxu0 %v204
    %229 = vmatprep.subr.bf16.mxu0 0
    %230 = vmatpush1.bf16.msra.mxu0 %v203
    %231 = vmatprep.subr.bf16.mxu0 0
    %232 = vmatpush1.bf16.msra.mxu0 %v202
    %233 = vmatprep.subr.bf16.mxu0 0
    %234 = vmatpush2.bf16.msra.mxu0 0
    %235 = vmatprep.subr.bf16.mxu0 0
    %236 = vmatpush2.bf16.msra.mxu0 0
    %237 = vmatprep.subr.bf16.mxu0 0
    %238 = vmatpush2.bf16.msra.mxu0 0
    %239 = vmatprep.subr.bf16.mxu0 0
    %240 = vmatpush2.bf16.msra.mxu0 0
    %241 = vmatprep.subr.bf16.mxu0 0
    %242 = vmatpush2.bf16.msra.mxu0 0
    %243 = vmatprep.subr.bf16.mxu0 0
    %244 = vmatpush2.bf16.msra.mxu0 0
    %245 = vmatprep.subr.bf16.mxu0 0
    %246 = vmatpush2.bf16.msra.mxu0 0
    %247 = vmatprep.subr.bf16.mxu0 0
    %248 = vmatpush2.bf16.msra.mxu0 0
    %249 = vmatprep.mubr.bf16.mxu0 0
    %250 = vmatmul.mubr.bf16.gmra.mxu0 %v212
    %v251 = vpop.f32.mrf.mxu0
    %v252 = vadd.f32 0.0, %v251
    %v253 = vpop.f32.mrf.mxu0
    %v254 = vpop.f32.mrf.mxu0
    %v255 = vadd.f32 0.0, %v254
    %v256 = vpop.f32.mrf.mxu0
    %257 = vmatprep.mubr.bf16.mxu0 0
    %258 = vmatmul.mubr.bf16.gmra.mxu0 %v215
    %v259 = vpop.f32.mrf.mxu0
    %v260 = vadd.f32 0.0, %v259
    %v261 = vpop.f32.mrf.mxu0
    %v262 = vpop.f32.mrf.mxu0
    %v263 = vadd.f32 0.0, %v262
    %v264 = vpop.f32.mrf.mxu0
    %265 = vdwg.mxu0
    %v266 = vmul.f32 %v156, 0.5
    %v267 = vmul.f32 %v160, 0.5
    %v268 = vmul.f32 %v166, 0.5
    %v269 = vmul.f32 %v170, 0.5
    %v270 = vmul.f32 %v266, %v252
    %v271 = vmul.f32 %v267, %v255
    %v272 = vmul.f32 %v268, %v260
    %v273 = vmul.f32 %v269, %v263
    %v274 = vmul.f32 %v156, %v156
    %v275 = vmul.f32 %v160, %v160
    %v276 = vmul.f32 %v166, %v166
    %v277 = vmul.f32 %v170, %v170
    %v278 = vsub.f32 %v270, %v274
    %v279 = vsub.f32 %v271, %v275
    %v280 = vsub.f32 %v272, %v276
    %v281 = vsub.f32 %v273, %v277
    %vm282 = vcmask 130048
    %v283 = vsel %vm282, %v278, 0.0
    %284 = vadd.xlane.f32.xlu0 %v283
    %v285 = vpop.xlane.xlu0 %284
    %v286 = vsel %vm282, %v279, 0.0
    %287 = vadd.xlane.f32.xlu0 %v286
    %v288 = vpop.xlane.xlu0 %287
    %v289 = vsel %vm282, %v280, 0.0
    %290 = vadd.xlane.f32.xlu0 %v289
    %v291 = vpop.xlane.xlu0 %290
    %v292 = vsel %vm282, %v281, 0.0
    %293 = vadd.xlane.f32.xlu0 %v292
    %v294 = vpop.xlane.xlu0 %293
    %299 = vrot.lane.b32.xlu0 %v278, 112
    %v300 = vpop.permute.xlu0 %299
    %301 = vrot.lane.b32.xlu0 %v279, 112
    %v302 = vpop.permute.xlu0 %301
    %303 = vrot.lane.b32.xlu0 %v280, 112
    %v304 = vpop.permute.xlu0 %303
    %305 = vrot.lane.b32.xlu0 %v281, 112
    %v306 = vpop.permute.xlu0 %305
    %v311 = vsel %vm282, %v300, 0.0
    %312 = vadd.xlane.f32.xlu0 %v311
    %v313 = vpop.xlane.xlu0 %312
    %v314 = vsel %vm282, %v302, 0.0
    %315 = vadd.xlane.f32.xlu0 %v314
    %v316 = vpop.xlane.xlu0 %315
    %v317 = vsel %vm282, %v304, 0.0
    %318 = vadd.xlane.f32.xlu0 %v317
    %v319 = vpop.xlane.xlu0 %318
    %v320 = vsel %vm282, %v306, 0.0
    %321 = vadd.xlane.f32.xlu0 %v320
    %v322 = vpop.xlane.xlu0 %321
    %vm323 = vcmp.lt.f32.partialorder %v313, %v285
    %vm324 = vcmp.lt.f32.partialorder %v316, %v288
    %vm325 = vcmp.lt.f32.partialorder %v319, %v291
    %vm326 = vcmp.lt.f32.partialorder %v322, %v294
    %v327 = vsel %vm323, %v313, %v285
    %v328 = vsel %vm324, %v316, %v288
    %v329 = vsel %vm325, %v319, %v291
    %v330 = vsel %vm326, %v322, %v294
    %v331 = vsel %vm323, 1, 0
    %v332 = vsel %vm324, 1, 0
    %v333 = vsel %vm325, 1, 0
    %v334 = vsel %vm326, 1, 0
    %335 = vrot.lane.b32.xlu0 %v278, 96
    %v336 = vpop.permute.xlu0 %335
    %337 = vrot.lane.b32.xlu0 %v279, 96
    %v338 = vpop.permute.xlu0 %337
    %339 = vrot.lane.b32.xlu0 %v280, 96
    %v340 = vpop.permute.xlu0 %339
    %341 = vrot.lane.b32.xlu0 %v281, 96
    %v342 = vpop.permute.xlu0 %341
    %v347 = vsel %vm282, %v336, 0.0
    %348 = vadd.xlane.f32.xlu0 %v347
    %v349 = vpop.xlane.xlu0 %348
    %v350 = vsel %vm282, %v338, 0.0
    %351 = vadd.xlane.f32.xlu0 %v350
    %v352 = vpop.xlane.xlu0 %351
    %v353 = vsel %vm282, %v340, 0.0
    %354 = vadd.xlane.f32.xlu0 %v353
    %v355 = vpop.xlane.xlu0 %354
    %v356 = vsel %vm282, %v342, 0.0
    %357 = vadd.xlane.f32.xlu0 %v356
    %v358 = vpop.xlane.xlu0 %357
    %vm359 = vcmp.lt.f32.partialorder %v349, %v327
    %vm360 = vcmp.lt.f32.partialorder %v352, %v328
    %vm361 = vcmp.lt.f32.partialorder %v355, %v329
    %vm362 = vcmp.lt.f32.partialorder %v358, %v330
    %v363 = vsel %vm359, %v349, %v327
    %v364 = vsel %vm360, %v352, %v328
    %v365 = vsel %vm361, %v355, %v329
    %v366 = vsel %vm362, %v358, %v330
    %v367 = vsel %vm359, 2, %v331
    %v368 = vsel %vm360, 2, %v332
    %v369 = vsel %vm361, 2, %v333
    %v370 = vsel %vm362, 2, %v334
    %371 = vrot.lane.b32.xlu0 %v278, 80
    %v372 = vpop.permute.xlu0 %371
    %373 = vrot.lane.b32.xlu0 %v279, 80
    %v374 = vpop.permute.xlu0 %373
    %375 = vrot.lane.b32.xlu0 %v280, 80
    %v376 = vpop.permute.xlu0 %375
    %377 = vrot.lane.b32.xlu0 %v281, 80
    %v378 = vpop.permute.xlu0 %377
    %v383 = vsel %vm282, %v372, 0.0
    %384 = vadd.xlane.f32.xlu0 %v383
    %v385 = vpop.xlane.xlu0 %384
    %v386 = vsel %vm282, %v374, 0.0
    %387 = vadd.xlane.f32.xlu0 %v386
    %v388 = vpop.xlane.xlu0 %387
    %v389 = vsel %vm282, %v376, 0.0
    %390 = vadd.xlane.f32.xlu0 %v389
    %v391 = vpop.xlane.xlu0 %390
    %v392 = vsel %vm282, %v378, 0.0
    %393 = vadd.xlane.f32.xlu0 %v392
    %v394 = vpop.xlane.xlu0 %393
    %vm395 = vcmp.lt.f32.partialorder %v385, %v363
    %vm396 = vcmp.lt.f32.partialorder %v388, %v364
    %vm397 = vcmp.lt.f32.partialorder %v391, %v365
    %vm398 = vcmp.lt.f32.partialorder %v394, %v366
    %v399 = vsel %vm395, 3, %v367
    %v400 = vsel %vm396, 3, %v368
    %v401 = vsel %vm397, 3, %v369
    %v402 = vsel %vm398, 3, %v370
    %v403 = vmul.u32 %v399, 16
    %v404 = vmul.u32 %v400, 16
    %v405 = vmul.u32 %v401, 16
    %v406 = vmul.u32 %v402, 16
    %vm407 = vcmp.ge.s32.totalorder %v175, %v403
    %vm408 = vcmp.ge.s32.totalorder %v175, %v404
    %vm409 = vcmp.ge.s32.totalorder %v175, %v405
    %vm410 = vcmp.ge.s32.totalorder %v175, %v406
    %v411 = vadd.s32 %v399, 1
    %v412 = vadd.s32 %v400, 1
    %v413 = vadd.s32 %v401, 1
    %v414 = vadd.s32 %v402, 1
    %v415 = vmul.u32 %v411, 16
    %v416 = vmul.u32 %v412, 16
    %v417 = vmul.u32 %v413, 16
    %v418 = vmul.u32 %v414, 16
    %vm419 = vcmp.lt.s32.totalorder %v175, %v415
    %vm420 = vcmp.lt.s32.totalorder %v175, %v416
    %vm421 = vcmp.lt.s32.totalorder %v175, %v417
    %vm422 = vcmp.lt.s32.totalorder %v175, %v418
    %vm423 = vmand %vm407, %vm419
    %vm424 = vmand %vm408, %vm420
    %vm425 = vmand %vm409, %vm421
    %vm426 = vmand %vm410, %vm422
    %v427 = vsel %vm423, %v156, 0.0
    %v428 = vsel %vm424, %v160, 0.0
    %v429 = vsel %vm425, %v166, 0.0
    %v430 = vsel %vm426, %v170, 0.0
    %v431 = vpack.c.bf16 %v428, %v427
    %v432 = vpack.c.bf16 %v430, %v429
    %v433 = vld [vmem:[%s3] sm:$0xf]
    %v434 = vld [vmem:[%s3 + $0x4] sm:$0xf]
    %v435 = vld [vmem:[%s3 + $0x8] sm:$0xf]
    %v436 = vld [vmem:[%s3 + $0xc] sm:$0xf]
    %v437 = vld [vmem:[%s3 + $0x10] sm:$0xf]
    %v438 = vld [vmem:[%s3 + $0x14] sm:$0xf]
    %v439 = vld [vmem:[%s3 + $0x18] sm:$0xf]
    %v440 = vld [vmem:[%s3 + $0x1c] sm:$0xf]
    %v449 = vunpack.c.l.b16 %v433
    %v450 = vunpack.c.l.b16 %v434
    %v451 = vunpack.c.l.b16 %v435
    %v452 = vunpack.c.l.b16 %v436
    %v453 = vunpack.c.l.b16 %v437
    %v454 = vunpack.c.l.b16 %v438
    %v455 = vunpack.c.l.b16 %v439
    %v456 = vunpack.c.l.b16 %v440
    %v457 = vpack.c.b16 %v450, %v449
    %v458 = vpack.c.b16 %v452, %v451
    %v459 = vpack.c.b16 %v454, %v453
    %v460 = vpack.c.b16 %v456, %v455
    %v466 = vsel %vm210, %v431, 0
    %v469 = vsel %vm210, %v432, 0
    %471 = vmatprep.subr.bf16.mxu0 0
    %472 = vmatpush1.bf16.msra.mxu0 0
    %473 = vmatprep.subr.bf16.mxu0 0
    %474 = vmatpush1.bf16.msra.mxu0 0
    %475 = vmatprep.subr.bf16.mxu0 0
    %476 = vmatpush1.bf16.msra.mxu0 0
    %477 = vmatprep.subr.bf16.mxu0 0
    %478 = vmatpush1.bf16.msra.mxu0 0
    %479 = vmatprep.subr.bf16.mxu0 0
    %480 = vmatpush1.bf16.msra.mxu0 %v460
    %481 = vmatprep.subr.bf16.mxu0 0
    %482 = vmatpush1.bf16.msra.mxu0 %v459
    %483 = vmatprep.subr.bf16.mxu0 0
    %484 = vmatpush1.bf16.msra.mxu0 %v458
    %485 = vmatprep.subr.bf16.mxu0 0
    %486 = vmatpush1.bf16.msra.mxu0 %v457
    %487 = vmatprep.subr.bf16.mxu0 0
    %488 = vmatpush2.bf16.msra.mxu0 0
    %489 = vmatprep.subr.bf16.mxu0 0
    %490 = vmatpush2.bf16.msra.mxu0 0
    %491 = vmatprep.subr.bf16.mxu0 0
    %492 = vmatpush2.bf16.msra.mxu0 0
    %493 = vmatprep.subr.bf16.mxu0 0
    %494 = vmatpush2.bf16.msra.mxu0 0
    %495 = vmatprep.subr.bf16.mxu0 0
    %496 = vmatpush2.bf16.msra.mxu0 0
    %497 = vmatprep.subr.bf16.mxu0 0
    %498 = vmatpush2.bf16.msra.mxu0 0
    %499 = vmatprep.subr.bf16.mxu0 0
    %500 = vmatpush2.bf16.msra.mxu0 0
    %501 = vmatprep.subr.bf16.mxu0 0
    %502 = vmatpush2.bf16.msra.mxu0 0
    %503 = vmatprep.mubr.bf16.mxu0 0
    %504 = vmatmul.mubr.bf16.gmra.mxu0 %v466
    %v505 = vpop.f32.mrf.mxu0
    %v506 = vadd.f32 0.0, %v505
    %v507 = vpop.f32.mrf.mxu0
    %v508 = vpop.f32.mrf.mxu0
    %v509 = vadd.f32 0.0, %v508
    %v510 = vpop.f32.mrf.mxu0
    %511 = vmatprep.mubr.bf16.mxu0 0
    %512 = vmatmul.mubr.bf16.gmra.mxu0 %v469
    %v513 = vpop.f32.mrf.mxu0
    %v514 = vadd.f32 0.0, %v513
    %v515 = vpop.f32.mrf.mxu0
    %v516 = vpop.f32.mrf.mxu0
    %v517 = vadd.f32 0.0, %v516
    %v518 = vpop.f32.mrf.mxu0
    %519 = vdwg.mxu0
    %520 = vst [vmem:[#allocation2] sm:$0xff] %v506
    %521 = vst [vmem:[#allocation2 + $0x8] sm:$0xff] %v509
    %522 = vst [vmem:[#allocation2 + $0x10] sm:$0xff] %v514
    %523 = vst [vmem:[#allocation2 + $0x18] sm:$0xff] %v517
    %s524 = scalar_lea.vmem %s2, 32
    %v525 = vld [vmem:[%s524] sm:$0xf]
    %v526 = vld [vmem:[%s524 + $0x4] sm:$0xf]
    %v527 = vld [vmem:[%s524 + $0x8] sm:$0xf]
    %v528 = vld [vmem:[%s524 + $0xc] sm:$0xf]
    %v529 = vld [vmem:[%s524 + $0x10] sm:$0xf]
    %v530 = vld [vmem:[%s524 + $0x14] sm:$0xf]
    %v531 = vld [vmem:[%s524 + $0x18] sm:$0xf]
    %v532 = vld [vmem:[%s524 + $0x1c] sm:$0xf]
    %535 = vrot.lane.b32.xlu0 %v176, 64
    %v536 = vpop.permute.xlu0 %535
    %537 = vrot.lane.b32.xlu0 %v177, 64
    %v538 = vpop.permute.xlu0 %537
    %v547 = vunpack.c.l.b16 %v525
    %v548 = vunpack.c.l.b16 %v526
    %v549 = vunpack.c.l.b16 %v527
    %v550 = vunpack.c.l.b16 %v528
    %v551 = vunpack.c.l.b16 %v529
    %v552 = vunpack.c.l.b16 %v530
    %v553 = vunpack.c.l.b16 %v531
    %v554 = vunpack.c.l.b16 %v532
    %v555 = vpack.c.b16 %v548, %v547
    %v556 = vpack.c.b16 %v550, %v549
    %v557 = vpack.c.b16 %v552, %v551
    %v558 = vpack.c.b16 %v554, %v553
    %v564 = vsel %vm210, %v536, 0
    %v567 = vsel %vm210, %v538, 0
    %569 = vmatprep.subr.bf16.mxu0 0
    %570 = vmatpush1.bf16.msra.mxu0 0
    %571 = vmatprep.subr.bf16.mxu0 0
    %572 = vmatpush1.bf16.msra.mxu0 0
    %573 = vmatprep.subr.bf16.mxu0 0
    %574 = vmatpush1.bf16.msra.mxu0 0
    %575 = vmatprep.subr.bf16.mxu0 0
    %576 = vmatpush1.bf16.msra.mxu0 0
    %577 = vmatprep.subr.bf16.mxu0 0
    %578 = vmatpush1.bf16.msra.mxu0 %v558
    %579 = vmatprep.subr.bf16.mxu0 0
    %580 = vmatpush1.bf16.msra.mxu0 %v557
    %581 = vmatprep.subr.bf16.mxu0 0
    %582 = vmatpush1.bf16.msra.mxu0 %v556
    %583 = vmatprep.subr.bf16.mxu0 0
    %584 = vmatpush1.bf16.msra.mxu0 %v555
    %585 = vmatprep.subr.bf16.mxu0 0
    %586 = vmatpush2.bf16.msra.mxu0 0
    %587 = vmatprep.subr.bf16.mxu0 0
    %588 = vmatpush2.bf16.msra.mxu0 0
    %589 = vmatprep.subr.bf16.mxu0 0
    %590 = vmatpush2.bf16.msra.mxu0 0
    %591 = vmatprep.subr.bf16.mxu0 0
    %592 = vmatpush2.bf16.msra.mxu0 0
    %593 = vmatprep.subr.bf16.mxu0 0
    %594 = vmatpush2.bf16.msra.mxu0 0
    %595 = vmatprep.subr.bf16.mxu0 0
    %596 = vmatpush2.bf16.msra.mxu0 0
    %597 = vmatprep.subr.bf16.mxu0 0
    %598 = vmatpush2.bf16.msra.mxu0 0
    %599 = vmatprep.subr.bf16.mxu0 0
    %600 = vmatpush2.bf16.msra.mxu0 0
    %601 = vmatprep.mubr.bf16.mxu0 0
    %602 = vmatmul.mubr.bf16.gmra.mxu0 %v564
    %v603 = vpop.f32.mrf.mxu0
    %v604 = vadd.f32 0.0, %v603
    %v605 = vpop.f32.mrf.mxu0
    %v606 = vpop.f32.mrf.mxu0
    %v607 = vadd.f32 0.0, %v606
    %v608 = vpop.f32.mrf.mxu0
    %609 = vmatprep.mubr.bf16.mxu0 0
    %610 = vmatmul.mubr.bf16.gmra.mxu0 %v567
    %v611 = vpop.f32.mrf.mxu0
    %v612 = vadd.f32 0.0, %v611
    %v613 = vpop.f32.mrf.mxu0
    %v614 = vpop.f32.mrf.mxu0
    %v615 = vadd.f32 0.0, %v614
    %v616 = vpop.f32.mrf.mxu0
    %617 = vdwg.mxu0
    %622 = vrot.lane.b32.xlu0 %v604, 64
    %v623 = vpop.permute.xlu0 %622
    %624 = vrot.lane.b32.xlu0 %v607, 64
    %v625 = vpop.permute.xlu0 %624
    %626 = vrot.lane.b32.xlu0 %v612, 64
    %v627 = vpop.permute.xlu0 %626
    %628 = vrot.lane.b32.xlu0 %v615, 64
    %v629 = vpop.permute.xlu0 %628
    %v634 = vmul.f32 %v266, %v623
    %v635 = vmul.f32 %v267, %v625
    %v636 = vmul.f32 %v268, %v627
    %v637 = vmul.f32 %v269, %v629
    %v638 = vsub.f32 %v634, %v274
    %v639 = vsub.f32 %v635, %v275
    %v640 = vsub.f32 %v636, %v276
    %v641 = vsub.f32 %v637, %v277
    %646 = vrot.lane.b32.xlu0 %v638, 64
    %v647 = vpop.permute.xlu0 %646
    %648 = vrot.lane.b32.xlu0 %v639, 64
    %v649 = vpop.permute.xlu0 %648
    %650 = vrot.lane.b32.xlu0 %v640, 64
    %v651 = vpop.permute.xlu0 %650
    %652 = vrot.lane.b32.xlu0 %v641, 64
    %v653 = vpop.permute.xlu0 %652
    %v658 = vsel %vm282, %v647, 0.0
    %659 = vadd.xlane.f32.xlu0 %v658
    %v660 = vpop.xlane.xlu0 %659
    %v661 = vsel %vm282, %v649, 0.0
    %662 = vadd.xlane.f32.xlu0 %v661
    %v663 = vpop.xlane.xlu0 %662
    %v664 = vsel %vm282, %v651, 0.0
    %665 = vadd.xlane.f32.xlu0 %v664
    %v666 = vpop.xlane.xlu0 %665
    %v667 = vsel %vm282, %v653, 0.0
    %668 = vadd.xlane.f32.xlu0 %v667
    %v669 = vpop.xlane.xlu0 %668
    %670 = vrot.lane.b32.xlu0 %v638, 48
    %v671 = vpop.permute.xlu0 %670
    %672 = vrot.lane.b32.xlu0 %v639, 48
    %v673 = vpop.permute.xlu0 %672
    %674 = vrot.lane.b32.xlu0 %v640, 48
    %v675 = vpop.permute.xlu0 %674
    %676 = vrot.lane.b32.xlu0 %v641, 48
    %v677 = vpop.permute.xlu0 %676
    %v682 = vsel %vm282, %v671, 0.0
    %683 = vadd.xlane.f32.xlu0 %v682
    %v684 = vpop.xlane.xlu0 %683
    %v685 = vsel %vm282, %v673, 0.0
    %686 = vadd.xlane.f32.xlu0 %v685
    %v687 = vpop.xlane.xlu0 %686
    %v688 = vsel %vm282, %v675, 0.0
    %689 = vadd.xlane.f32.xlu0 %v688
    %v690 = vpop.xlane.xlu0 %689
    %v691 = vsel %vm282, %v677, 0.0
    %692 = vadd.xlane.f32.xlu0 %v691
    %v693 = vpop.xlane.xlu0 %692
    %vm694 = vcmp.lt.f32.partialorder %v684, %v660
    %vm695 = vcmp.lt.f32.partialorder %v687, %v663
    %vm696 = vcmp.lt.f32.partialorder %v690, %v666
    %vm697 = vcmp.lt.f32.partialorder %v693, %v669
    %v698 = vsel %vm694, %v684, %v660
    %v699 = vsel %vm695, %v687, %v663
    %v700 = vsel %vm696, %v690, %v666
    %v701 = vsel %vm697, %v693, %v669
    %v702 = vsel %vm694, 1, 0
    %v703 = vsel %vm695, 1, 0
    %v704 = vsel %vm696, 1, 0
    %v705 = vsel %vm697, 1, 0
    %706 = vrot.lane.b32.xlu0 %v638, 32
    %v707 = vpop.permute.xlu0 %706
    %708 = vrot.lane.b32.xlu0 %v639, 32
    %v709 = vpop.permute.xlu0 %708
    %710 = vrot.lane.b32.xlu0 %v640, 32
    %v711 = vpop.permute.xlu0 %710
    %712 = vrot.lane.b32.xlu0 %v641, 32
    %v713 = vpop.permute.xlu0 %712
    %v718 = vsel %vm282, %v707, 0.0
    %719 = vadd.xlane.f32.xlu0 %v718
    %v720 = vpop.xlane.xlu0 %719
    %v721 = vsel %vm282, %v709, 0.0
    %722 = vadd.xlane.f32.xlu0 %v721
    %v723 = vpop.xlane.xlu0 %722
    %v724 = vsel %vm282, %v711, 0.0
    %725 = vadd.xlane.f32.xlu0 %v724
    %v726 = vpop.xlane.xlu0 %725
    %v727 = vsel %vm282, %v713, 0.0
    %728 = vadd.xlane.f32.xlu0 %v727
    %v729 = vpop.xlane.xlu0 %728
    %vm730 = vcmp.lt.f32.partialorder %v720, %v698
    %vm731 = vcmp.lt.f32.partialorder %v723, %v699
    %vm732 = vcmp.lt.f32.partialorder %v726, %v700
    %vm733 = vcmp.lt.f32.partialorder %v729, %v701
    %v734 = vsel %vm730, %v720, %v698
    %v735 = vsel %vm731, %v723, %v699
    %v736 = vsel %vm732, %v726, %v700
    %v737 = vsel %vm733, %v729, %v701
    %v738 = vsel %vm730, 2, %v702
    %v739 = vsel %vm731, 2, %v703
    %v740 = vsel %vm732, 2, %v704
    %v741 = vsel %vm733, 2, %v705
    %742 = vrot.lane.b32.xlu0 %v638, 16
    %v743 = vpop.permute.xlu0 %742
    %744 = vrot.lane.b32.xlu0 %v639, 16
    %v745 = vpop.permute.xlu0 %744
    %746 = vrot.lane.b32.xlu0 %v640, 16
    %v747 = vpop.permute.xlu0 %746
    %748 = vrot.lane.b32.xlu0 %v641, 16
    %v749 = vpop.permute.xlu0 %748
    %v754 = vsel %vm282, %v743, 0.0
    %755 = vadd.xlane.f32.xlu0 %v754
    %v756 = vpop.xlane.xlu0 %755
    %v757 = vsel %vm282, %v745, 0.0
    %758 = vadd.xlane.f32.xlu0 %v757
    %v759 = vpop.xlane.xlu0 %758
    %v760 = vsel %vm282, %v747, 0.0
    %761 = vadd.xlane.f32.xlu0 %v760
    %v762 = vpop.xlane.xlu0 %761
    %v763 = vsel %vm282, %v749, 0.0
    %764 = vadd.xlane.f32.xlu0 %v763
    %v765 = vpop.xlane.xlu0 %764
    %vm766 = vcmp.lt.f32.partialorder %v756, %v734
    %vm767 = vcmp.lt.f32.partialorder %v759, %v735
    %vm768 = vcmp.lt.f32.partialorder %v762, %v736
    %vm769 = vcmp.lt.f32.partialorder %v765, %v737
    %v770 = vsel %vm766, 3, %v738
    %v771 = vsel %vm767, 3, %v739
    %v772 = vsel %vm768, 3, %v740
    %v773 = vsel %vm769, 3, %v741
    %v774 = vmul.u32 %v770, 16
    %v775 = vmul.u32 %v771, 16
    %v776 = vmul.u32 %v772, 16
    %v777 = vmul.u32 %v773, 16
    %vm778 = vcmp.ge.s32.totalorder %v175, %v774
    %vm779 = vcmp.ge.s32.totalorder %v175, %v775
    %vm780 = vcmp.ge.s32.totalorder %v175, %v776
    %vm781 = vcmp.ge.s32.totalorder %v175, %v777
    %v782 = vadd.s32 %v770, 1
    %v783 = vadd.s32 %v771, 1
    %v784 = vadd.s32 %v772, 1
    %v785 = vadd.s32 %v773, 1
    %v786 = vmul.u32 %v782, 16
    %v787 = vmul.u32 %v783, 16
    %v788 = vmul.u32 %v784, 16
    %v789 = vmul.u32 %v785, 16
    %vm790 = vcmp.lt.s32.totalorder %v175, %v786
    %vm791 = vcmp.lt.s32.totalorder %v175, %v787
    %vm792 = vcmp.lt.s32.totalorder %v175, %v788
    %vm793 = vcmp.lt.s32.totalorder %v175, %v789
    %vm794 = vmand %vm778, %vm790
    %vm795 = vmand %vm779, %vm791
    %vm796 = vmand %vm780, %vm792
    %vm797 = vmand %vm781, %vm793
    %802 = vrot.lane.b32.xlu0 %v156, 64
    %v803 = vpop.permute.xlu0 %802
    %804 = vrot.lane.b32.xlu0 %v160, 64
    %v805 = vpop.permute.xlu0 %804
    %806 = vrot.lane.b32.xlu0 %v166, 64
    %v807 = vpop.permute.xlu0 %806
    %808 = vrot.lane.b32.xlu0 %v170, 64
    %v809 = vpop.permute.xlu0 %808
    %v814 = vsel %vm794, %v803, 0.0
    %v815 = vsel %vm795, %v805, 0.0
    %v816 = vsel %vm796, %v807, 0.0
    %v817 = vsel %vm797, %v809, 0.0
    %v818 = vpack.c.bf16 %v815, %v814
    %v819 = vpack.c.bf16 %v817, %v816
    %s820 = scalar_lea.vmem %s3, 32
    %v821 = vld [vmem:[%s820] sm:$0xf]
    %v822 = vld [vmem:[%s820 + $0x4] sm:$0xf]
    %v823 = vld [vmem:[%s820 + $0x8] sm:$0xf]
    %v824 = vld [vmem:[%s820 + $0xc] sm:$0xf]
    %v825 = vld [vmem:[%s820 + $0x10] sm:$0xf]
    %v826 = vld [vmem:[%s820 + $0x14] sm:$0xf]
    %v827 = vld [vmem:[%s820 + $0x18] sm:$0xf]
    %v828 = vld [vmem:[%s820 + $0x1c] sm:$0xf]
    %v837 = vunpack.c.l.b16 %v821
    %v838 = vunpack.c.l.b16 %v822
    %v839 = vunpack.c.l.b16 %v823
    %v840 = vunpack.c.l.b16 %v824
    %v841 = vunpack.c.l.b16 %v825
    %v842 = vunpack.c.l.b16 %v826
    %v843 = vunpack.c.l.b16 %v827
    %v844 = vunpack.c.l.b16 %v828
    %v845 = vpack.c.b16 %v838, %v837
    %v846 = vpack.c.b16 %v840, %v839
    %v847 = vpack.c.b16 %v842, %v841
    %v848 = vpack.c.b16 %v844, %v843
    %v854 = vsel %vm210, %v818, 0
    %v857 = vsel %vm210, %v819, 0
    %859 = vmatprep.subr.bf16.mxu0 0
    %860 = vmatpush1.bf16.msra.mxu0 0
    %861 = vmatprep.subr.bf16.mxu0 0
    %862 = vmatpush1.bf16.msra.mxu0 0
    %863 = vmatprep.subr.bf16.mxu0 0
    %864 = vmatpush1.bf16.msra.mxu0 0
    %865 = vmatprep.subr.bf16.mxu0 0
    %866 = vmatpush1.bf16.msra.mxu0 0
    %867 = vmatprep.subr.bf16.mxu0 0
    %868 = vmatpush1.bf16.msra.mxu0 %v848
    %869 = vmatprep.subr.bf16.mxu0 0
    %870 = vmatpush1.bf16.msra.mxu0 %v847
    %871 = vmatprep.subr.bf16.mxu0 0
    %872 = vmatpush1.bf16.msra.mxu0 %v846
    %873 = vmatprep.subr.bf16.mxu0 0
    %874 = vmatpush1.bf16.msra.mxu0 %v845
    %875 = vmatprep.subr.bf16.mxu0 0
    %876 = vmatpush2.bf16.msra.mxu0 0
    %877 = vmatprep.subr.bf16.mxu0 0
    %878 = vmatpush2.bf16.msra.mxu0 0
    %879 = vmatprep.subr.bf16.mxu0 0
    %880 = vmatpush2.bf16.msra.mxu0 0
    %881 = vmatprep.subr.bf16.mxu0 0
    %882 = vmatpush2.bf16.msra.mxu0 0
    %883 = vmatprep.subr.bf16.mxu0 0
    %884 = vmatpush2.bf16.msra.mxu0 0
    %885 = vmatprep.subr.bf16.mxu0 0
    %886 = vmatpush2.bf16.msra.mxu0 0
    %887 = vmatprep.subr.bf16.mxu0 0
    %888 = vmatpush2.bf16.msra.mxu0 0
    %889 = vmatprep.subr.bf16.mxu0 0
    %890 = vmatpush2.bf16.msra.mxu0 0
    %891 = vmatprep.mubr.bf16.mxu0 0
    %892 = vmatmul.mubr.bf16.gmra.mxu0 %v854
    %v893 = vpop.f32.mrf.mxu0
    %v894 = vadd.f32 0.0, %v893
    %v895 = vpop.f32.mrf.mxu0
    %v896 = vpop.f32.mrf.mxu0
    %v897 = vadd.f32 0.0, %v896
    %v898 = vpop.f32.mrf.mxu0
    %899 = vmatprep.mubr.bf16.mxu0 0
    %900 = vmatmul.mubr.bf16.gmra.mxu0 %v857
    %v901 = vpop.f32.mrf.mxu0
    %v902 = vadd.f32 0.0, %v901
    %v903 = vpop.f32.mrf.mxu0
    %v904 = vpop.f32.mrf.mxu0
    %v905 = vadd.f32 0.0, %v904
    %v906 = vpop.f32.mrf.mxu0
    %907 = vdwg.mxu0
    %s908 = scalar_lea.vmem [#allocation2], 32
    %909 = vst [vmem:[%s908] sm:$0xff] %v894
    %910 = vst [vmem:[%s908 + $0x8] sm:$0xff] %v897
    %911 = vst [vmem:[%s908 + $0x10] sm:$0xff] %v902
    %912 = vst [vmem:[%s908 + $0x18] sm:$0xff] %v905
    %v913 = vpack.c.bf16 %v162, %v158
    %v914 = vpack.c.bf16 %v172, %v168
    %s915 = scalar_lea.vmem %s2, 64
    %v916 = vld [vmem:[%s915] sm:$0xf]
    %v917 = vld [vmem:[%s915 + $0x4] sm:$0xf]
    %v918 = vld [vmem:[%s915 + $0x8] sm:$0xf]
    %v919 = vld [vmem:[%s915 + $0xc] sm:$0xf]
    %v920 = vld [vmem:[%s915 + $0x10] sm:$0xf]
    %v921 = vld [vmem:[%s915 + $0x14] sm:$0xf]
    %v922 = vld [vmem:[%s915 + $0x18] sm:$0xf]
    %v923 = vld [vmem:[%s915 + $0x1c] sm:$0xf]
    %v932 = vunpack.c.l.b16 %v916
    %v933 = vunpack.c.l.b16 %v917
    %v934 = vunpack.c.l.b16 %v918
    %v935 = vunpack.c.l.b16 %v919
    %v936 = vunpack.c.l.b16 %v920
    %v937 = vunpack.c.l.b16 %v921
    %v938 = vunpack.c.l.b16 %v922
    %v939 = vunpack.c.l.b16 %v923
    %v940 = vpack.c.b16 %v933, %v932
    %v941 = vpack.c.b16 %v935, %v934
    %v942 = vpack.c.b16 %v937, %v936
    %v943 = vpack.c.b16 %v939, %v938
    %v949 = vsel %vm210, %v913, 0
    %v952 = vsel %vm210, %v914, 0
    %954 = vmatprep.subr.bf16.mxu0 0
    %955 = vmatpush1.bf16.msra.mxu0 0
    %956 = vmatprep.subr.bf16.mxu0 0
    %957 = vmatpush1.bf16.msra.mxu0 0
    %958 = vmatprep.subr.bf16.mxu0 0
    %959 = vmatpush1.bf16.msra.mxu0 0
    %960 = vmatprep.subr.bf16.mxu0 0
    %961 = vmatpush1.bf16.msra.mxu0 0
    %962 = vmatprep.subr.bf16.mxu0 0
    %963 = vmatpush1.bf16.msra.mxu0 %v943
    %964 = vmatprep.subr.bf16.mxu0 0
    %965 = vmatpush1.bf16.msra.mxu0 %v942
    %966 = vmatprep.subr.bf16.mxu0 0
    %967 = vmatpush1.bf16.msra.mxu0 %v941
    %968 = vmatprep.subr.bf16.mxu0 0
    %969 = vmatpush1.bf16.msra.mxu0 %v940
    %970 = vmatprep.subr.bf16.mxu0 0
    %971 = vmatpush2.bf16.msra.mxu0 0
    %972 = vmatprep.subr.bf16.mxu0 0
    %973 = vmatpush2.bf16.msra.mxu0 0
    %974 = vmatprep.subr.bf16.mxu0 0
    %975 = vmatpush2.bf16.msra.mxu0 0
    %976 = vmatprep.subr.bf16.mxu0 0
    %977 = vmatpush2.bf16.msra.mxu0 0
    %978 = vmatprep.subr.bf16.mxu0 0
    %979 = vmatpush2.bf16.msra.mxu0 0
    %980 = vmatprep.subr.bf16.mxu0 0
    %981 = vmatpush2.bf16.msra.mxu0 0
    %982 = vmatprep.subr.bf16.mxu0 0
    %983 = vmatpush2.bf16.msra.mxu0 0
    %984 = vmatprep.subr.bf16.mxu0 0
    %985 = vmatpush2.bf16.msra.mxu0 0
    %986 = vmatprep.mubr.bf16.mxu0 0
    %987 = vmatmul.mubr.bf16.gmra.mxu0 %v949
    %v988 = vpop.f32.mrf.mxu0
    %v989 = vadd.f32 0.0, %v988
    %v990 = vpop.f32.mrf.mxu0
    %v991 = vpop.f32.mrf.mxu0
    %v992 = vadd.f32 0.0, %v991
    %v993 = vpop.f32.mrf.mxu0
    %994 = vmatprep.mubr.bf16.mxu0 0
    %995 = vmatmul.mubr.bf16.gmra.mxu0 %v952
    %v996 = vpop.f32.mrf.mxu0
    %v997 = vadd.f32 0.0, %v996
    %v998 = vpop.f32.mrf.mxu0
    %v999 = vpop.f32.mrf.mxu0
    %v1000 = vadd.f32 0.0, %v999
    %v1001 = vpop.f32.mrf.mxu0
    %1002 = vdwg.mxu0
    %v1003 = vmul.f32 %v158, 0.5
    %v1004 = vmul.f32 %v162, 0.5
    %v1005 = vmul.f32 %v168, 0.5
    %v1006 = vmul.f32 %v172, 0.5
    %v1007 = vmul.f32 %v1003, %v989
    %v1008 = vmul.f32 %v1004, %v992
    %v1009 = vmul.f32 %v1005, %v997
    %v1010 = vmul.f32 %v1006, %v1000
    %v1011 = vmul.f32 %v158, %v158
    %v1012 = vmul.f32 %v162, %v162
    %v1013 = vmul.f32 %v168, %v168
    %v1014 = vmul.f32 %v172, %v172
    %v1015 = vsub.f32 %v1007, %v1011
    %v1016 = vsub.f32 %v1008, %v1012
    %v1017 = vsub.f32 %v1009, %v1013
    %v1018 = vsub.f32 %v1010, %v1014
    %v1019 = vsel %vm282, %v1015, 0.0
    %1020 = vadd.xlane.f32.xlu0 %v1019
    %v1021 = vpop.xlane.xlu0 %1020
    %v1022 = vsel %vm282, %v1016, 0.0
    %1023 = vadd.xlane.f32.xlu0 %v1022
    %v1024 = vpop.xlane.xlu0 %1023
    %v1025 = vsel %vm282, %v1017, 0.0
    %1026 = vadd.xlane.f32.xlu0 %v1025
    %v1027 = vpop.xlane.xlu0 %1026
    %v1028 = vsel %vm282, %v1018, 0.0
    %1029 = vadd.xlane.f32.xlu0 %v1028
    %v1030 = vpop.xlane.xlu0 %1029
    %1035 = vrot.lane.b32.xlu0 %v1015, 112
    %v1036 = vpop.permute.xlu0 %1035
    %1037 = vrot.lane.b32.xlu0 %v1016, 112
    %v1038 = vpop.permute.xlu0 %1037
    %1039 = vrot.lane.b32.xlu0 %v1017, 112
    %v1040 = vpop.permute.xlu0 %1039
    %1041 = vrot.lane.b32.xlu0 %v1018, 112
    %v1042 = vpop.permute.xlu0 %1041
    %v1047 = vsel %vm282, %v1036, 0.0
    %1048 = vadd.xlane.f32.xlu0 %v1047
    %v1049 = vpop.xlane.xlu0 %1048
    %v1050 = vsel %vm282, %v1038, 0.0
    %1051 = vadd.xlane.f32.xlu0 %v1050
    %v1052 = vpop.xlane.xlu0 %1051
    %v1053 = vsel %vm282, %v1040, 0.0
    %1054 = vadd.xlane.f32.xlu0 %v1053
    %v1055 = vpop.xlane.xlu0 %1054
    %v1056 = vsel %vm282, %v1042, 0.0
    %1057 = vadd.xlane.f32.xlu0 %v1056
    %v1058 = vpop.xlane.xlu0 %1057
    %vm1059 = vcmp.lt.f32.partialorder %v1049, %v1021
    %vm1060 = vcmp.lt.f32.partialorder %v1052, %v1024
    %vm1061 = vcmp.lt.f32.partialorder %v1055, %v1027
    %vm1062 = vcmp.lt.f32.partialorder %v1058, %v1030
    %v1063 = vsel %vm1059, %v1049, %v1021
    %v1064 = vsel %vm1060, %v1052, %v1024
    %v1065 = vsel %vm1061, %v1055, %v1027
    %v1066 = vsel %vm1062, %v1058, %v1030
    %v1067 = vsel %vm1059, 1, 0
    %v1068 = vsel %vm1060, 1, 0
    %v1069 = vsel %vm1061, 1, 0
    %v1070 = vsel %vm1062, 1, 0
    %1071 = vrot.lane.b32.xlu0 %v1015, 96
    %v1072 = vpop.permute.xlu0 %1071
    %1073 = vrot.lane.b32.xlu0 %v1016, 96
    %v1074 = vpop.permute.xlu0 %1073
    %1075 = vrot.lane.b32.xlu0 %v1017, 96
    %v1076 = vpop.permute.xlu0 %1075
    %1077 = vrot.lane.b32.xlu0 %v1018, 96
    %v1078 = vpop.permute.xlu0 %1077
    %v1083 = vsel %vm282, %v1072, 0.0
    %1084 = vadd.xlane.f32.xlu0 %v1083
    %v1085 = vpop.xlane.xlu0 %1084
    %v1086 = vsel %vm282, %v1074, 0.0
    %1087 = vadd.xlane.f32.xlu0 %v1086
    %v1088 = vpop.xlane.xlu0 %1087
    %v1089 = vsel %vm282, %v1076, 0.0
    %1090 = vadd.xlane.f32.xlu0 %v1089
    %v1091 = vpop.xlane.xlu0 %1090
    %v1092 = vsel %vm282, %v1078, 0.0
    %1093 = vadd.xlane.f32.xlu0 %v1092
    %v1094 = vpop.xlane.xlu0 %1093
    %vm1095 = vcmp.lt.f32.partialorder %v1085, %v1063
    %vm1096 = vcmp.lt.f32.partialorder %v1088, %v1064
    %vm1097 = vcmp.lt.f32.partialorder %v1091, %v1065
    %vm1098 = vcmp.lt.f32.partialorder %v1094, %v1066
    %v1099 = vsel %vm1095, %v1085, %v1063
    %v1100 = vsel %vm1096, %v1088, %v1064
    %v1101 = vsel %vm1097, %v1091, %v1065
    %v1102 = vsel %vm1098, %v1094, %v1066
    %v1103 = vsel %vm1095, 2, %v1067
    %v1104 = vsel %vm1096, 2, %v1068
    %v1105 = vsel %vm1097, 2, %v1069
    %v1106 = vsel %vm1098, 2, %v1070
    %1107 = vrot.lane.b32.xlu0 %v1015, 80
    %v1108 = vpop.permute.xlu0 %1107
    %1109 = vrot.lane.b32.xlu0 %v1016, 80
    %v1110 = vpop.permute.xlu0 %1109
    %1111 = vrot.lane.b32.xlu0 %v1017, 80
    %v1112 = vpop.permute.xlu0 %1111
    %1113 = vrot.lane.b32.xlu0 %v1018, 80
    %v1114 = vpop.permute.xlu0 %1113
    %v1119 = vsel %vm282, %v1108, 0.0
    %1120 = vadd.xlane.f32.xlu0 %v1119
    %v1121 = vpop.xlane.xlu0 %1120
    %v1122 = vsel %vm282, %v1110, 0.0
    %1123 = vadd.xlane.f32.xlu0 %v1122
    %v1124 = vpop.xlane.xlu0 %1123
    %v1125 = vsel %vm282, %v1112, 0.0
    %1126 = vadd.xlane.f32.xlu0 %v1125
    %v1127 = vpop.xlane.xlu0 %1126
    %v1128 = vsel %vm282, %v1114, 0.0
    %1129 = vadd.xlane.f32.xlu0 %v1128
    %v1130 = vpop.xlane.xlu0 %1129
    %vm1131 = vcmp.lt.f32.partialorder %v1121, %v1099
    %vm1132 = vcmp.lt.f32.partialorder %v1124, %v1100
    %vm1133 = vcmp.lt.f32.partialorder %v1127, %v1101
    %vm1134 = vcmp.lt.f32.partialorder %v1130, %v1102
    %v1135 = vsel %vm1131, 3, %v1103
    %v1136 = vsel %vm1132, 3, %v1104
    %v1137 = vsel %vm1133, 3, %v1105
    %v1138 = vsel %vm1134, 3, %v1106
    %v1139 = vmul.u32 %v1135, 16
    %v1140 = vmul.u32 %v1136, 16
    %v1141 = vmul.u32 %v1137, 16
    %v1142 = vmul.u32 %v1138, 16
    %vm1143 = vcmp.ge.s32.totalorder %v175, %v1139
    %vm1144 = vcmp.ge.s32.totalorder %v175, %v1140
    %vm1145 = vcmp.ge.s32.totalorder %v175, %v1141
    %vm1146 = vcmp.ge.s32.totalorder %v175, %v1142
    %v1147 = vadd.s32 %v1135, 1
    %v1148 = vadd.s32 %v1136, 1
    %v1149 = vadd.s32 %v1137, 1
    %v1150 = vadd.s32 %v1138, 1
    %v1151 = vmul.u32 %v1147, 16
    %v1152 = vmul.u32 %v1148, 16
    %v1153 = vmul.u32 %v1149, 16
    %v1154 = vmul.u32 %v1150, 16
    %vm1155 = vcmp.lt.s32.totalorder %v175, %v1151
    %vm1156 = vcmp.lt.s32.totalorder %v175, %v1152
    %vm1157 = vcmp.lt.s32.totalorder %v175, %v1153
    %vm1158 = vcmp.lt.s32.totalorder %v175, %v1154
    %vm1159 = vmand %vm1143, %vm1155
    %vm1160 = vmand %vm1144, %vm1156
    %vm1161 = vmand %vm1145, %vm1157
    %vm1162 = vmand %vm1146, %vm1158
    %v1163 = vsel %vm1159, %v158, 0.0
    %v1164 = vsel %vm1160, %v162, 0.0
    %v1165 = vsel %vm1161, %v168, 0.0
    %v1166 = vsel %vm1162, %v172, 0.0
    %v1167 = vpack.c.bf16 %v1164, %v1163
    %v1168 = vpack.c.bf16 %v1166, %v1165
    %s1169 = scalar_lea.vmem %s3, 64
    %v1170 = vld [vmem:[%s1169] sm:$0xf]
    %v1171 = vld [vmem:[%s1169 + $0x4] sm:$0xf]
    %v1172 = vld [vmem:[%s1169 + $0x8] sm:$0xf]
    %v1173 = vld [vmem:[%s1169 + $0xc] sm:$0xf]
    %v1174 = vld [vmem:[%s1169 + $0x10] sm:$0xf]
    %v1175 = vld [vmem:[%s1169 + $0x14] sm:$0xf]
    %v1176 = vld [vmem:[%s1169 + $0x18] sm:$0xf]
    %v1177 = vld [vmem:[%s1169 + $0x1c] sm:$0xf]
    %v1186 = vunpack.c.l.b16 %v1170
    %v1187 = vunpack.c.l.b16 %v1171
    %v1188 = vunpack.c.l.b16 %v1172
    %v1189 = vunpack.c.l.b16 %v1173
    %v1190 = vunpack.c.l.b16 %v1174
    %v1191 = vunpack.c.l.b16 %v1175
    %v1192 = vunpack.c.l.b16 %v1176
    %v1193 = vunpack.c.l.b16 %v1177
    %v1194 = vpack.c.b16 %v1187, %v1186
    %v1195 = vpack.c.b16 %v1189, %v1188
    %v1196 = vpack.c.b16 %v1191, %v1190
    %v1197 = vpack.c.b16 %v1193, %v1192
    %v1203 = vsel %vm210, %v1167, 0
    %v1206 = vsel %vm210, %v1168, 0
    %1208 = vmatprep.subr.bf16.mxu0 0
    %1209 = vmatpush1.bf16.msra.mxu0 0
    %1210 = vmatprep.subr.bf16.mxu0 0
    %1211 = vmatpush1.bf16.msra.mxu0 0
    %1212 = vmatprep.subr.bf16.mxu0 0
    %1213 = vmatpush1.bf16.msra.mxu0 0
    %1214 = vmatprep.subr.bf16.mxu0 0
    %1215 = vmatpush1.bf16.msra.mxu0 0
    %1216 = vmatprep.subr.bf16.mxu0 0
    %1217 = vmatpush1.bf16.msra.mxu0 %v1197
    %1218 = vmatprep.subr.bf16.mxu0 0
    %1219 = vmatpush1.bf16.msra.mxu0 %v1196
    %1220 = vmatprep.subr.bf16.mxu0 0
    %1221 = vmatpush1.bf16.msra.mxu0 %v1195
    %1222 = vmatprep.subr.bf16.mxu0 0
    %1223 = vmatpush1.bf16.msra.mxu0 %v1194
    %1224 = vmatprep.subr.bf16.mxu0 0
    %1225 = vmatpush2.bf16.msra.mxu0 0
    %1226 = vmatprep.subr.bf16.mxu0 0
    %1227 = vmatpush2.bf16.msra.mxu0 0
    %1228 = vmatprep.subr.bf16.mxu0 0
    %1229 = vmatpush2.bf16.msra.mxu0 0
    %1230 = vmatprep.subr.bf16.mxu0 0
    %1231 = vmatpush2.bf16.msra.mxu0 0
    %1232 = vmatprep.subr.bf16.mxu0 0
    %1233 = vmatpush2.bf16.msra.mxu0 0
    %1234 = vmatprep.subr.bf16.mxu0 0
    %1235 = vmatpush2.bf16.msra.mxu0 0
    %1236 = vmatprep.subr.bf16.mxu0 0
    %1237 = vmatpush2.bf16.msra.mxu0 0
    %1238 = vmatprep.subr.bf16.mxu0 0
    %1239 = vmatpush2.bf16.msra.mxu0 0
    %1240 = vmatprep.mubr.bf16.mxu0 0
    %1241 = vmatmul.mubr.bf16.gmra.mxu0 %v1203
    %v1242 = vpop.f32.mrf.mxu0
    %v1243 = vadd.f32 0.0, %v1242
    %v1244 = vpop.f32.mrf.mxu0
    %v1245 = vpop.f32.mrf.mxu0
    %v1246 = vadd.f32 0.0, %v1245
    %v1247 = vpop.f32.mrf.mxu0
    %1248 = vmatprep.mubr.bf16.mxu0 0
    %1249 = vmatmul.mubr.bf16.gmra.mxu0 %v1206
    %v1250 = vpop.f32.mrf.mxu0
    %v1251 = vadd.f32 0.0, %v1250
    %v1252 = vpop.f32.mrf.mxu0
    %v1253 = vpop.f32.mrf.mxu0
    %v1254 = vadd.f32 0.0, %v1253
    %v1255 = vpop.f32.mrf.mxu0
    %1256 = vdwg.mxu0
    %s1257 = scalar_lea.vmem [#allocation2], 64
    %1258 = vst [vmem:[%s1257] sm:$0xff] %v1243
    %1259 = vst [vmem:[%s1257 + $0x8] sm:$0xff] %v1246
    %1260 = vst [vmem:[%s1257 + $0x10] sm:$0xff] %v1251
    %1261 = vst [vmem:[%s1257 + $0x18] sm:$0xff] %v1254
    // Predicated region
    $region18: #{ksubspace_forward.1} parent=1 // pred_check
      _
    $region19: #{ksubspace_forward.1} parent=1 // pred_check_branch
      %1263 = sbr.rel (0) target = $region21
    $region20: #{ksubspace_forward.1} parent=1 // pred_region
      %s1265 = ssub.s32 1536, 1536
      %1266 = vsyncadd [#allocation3], %s1265
      %s1267 = sshll.u32 [#allocation2], 4
      %s1268 = int_to_ptr.vmem [resolvable:$true] %s1267
      %1273 = dma.vmem_to_hbm [thread:$0]  %s1268, 1536, %s4, [#allocation3], 128, 128, 8
    $region21: #{ksubspace_forward.1} parent=1 // pred_fallthru
      _
    // Predicated region
    $region22: #{ksubspace_forward.1} parent=1 // pred_check
      _
    $region23: #{ksubspace_forward.1} parent=1 // pred_check_branch
      %1275 = sbr.rel (0) target = $region25
    $region24: #{ksubspace_forward.1} parent=1 // pred_region
      %1276 = dma.done [#allocation3], 1536
    $region25: #{ksubspace_forward.1} parent=1 // pred_fallthru
      _
    %1277 = vsyncpa [#allocation3], 1

</llo_original>
